<compile_context>
chip_gen: v5e
topology: v5e:2x2
jax: 0.10.0
libtpu: 0.0.40
codegen_flags: <defaults>
</compile_context>

<pallas_src>
import functools

import jax
import jax.numpy as jnp
from jax import lax
from jax.experimental import pallas as pl
from jax.experimental.pallas import tpu as pltpu


def self_attn_kernel(n_valid, xkv_ref, xres_ref, wqT_ref, bq_ref, wk_ref,
                     bk_ref, wvT_ref, bv_ref, gamma_ref, out_ref, att_ref,
                     kT_sc, v_sc):
    tq = out_ref.shape[0]          # query-tile size
    np_total = kT_sc.shape[1]      # padded sequence length (lane-dense)
    j = pl.program_id(1)           # query-tile index

    # --- K/V projection hoisted out of the query-tile loop: run once per batch
    # element (j == 0) into persistent VMEM scratch (the j axis is "arbitrary").
    @pl.when(j == 0)
    def _():
        x_all = xkv_ref[...]                                           # (Np, C) bf16
        v = jnp.dot(x_all, wvT_ref[...],
                    preferred_element_type=jnp.float32) + bv_ref[...]  # (Np, C) f32
        v_sc[...] = v.astype(jnp.bfloat16)
        # Key stored pre-transposed (Ch, Np) so the per-tile energy matmul is a
        # plain (M,K)@(K,N) contraction (no per-step XLU transpose of K).
        kT = lax.dot_general(wk_ref[...], x_all, (((1,), (1,)), ((), ())),
                             preferred_element_type=jnp.float32)       # (Ch, Np) f32
        kT_sc[...] = (kT + bk_ref[...]).astype(jnp.bfloat16)

    # --- Query projection for this tile only (bf16 MXU inputs, f32 accumulate).
    q_start = pl.multiple_of(j * tq, tq)
    xq = xkv_ref[pl.ds(q_start, tq), :]                                # (TQ, C) bf16
    q = jnp.dot(xq, wqT_ref[...],
                preferred_element_type=jnp.float32) + bq_ref[...]      # (TQ, Ch) f32

    # --- energy[i, m] = <q_i, k_m>    (torch: bmm(Q^T, K))
    energy = jnp.dot(q.astype(jnp.bfloat16), kT_sc[...],
                     preferred_element_type=jnp.float32)               # (TQ, Np) f32

    if n_valid != np_total:  # static: only compiled when the key axis is padded
        lane = lax.broadcasted_iota(jnp.int32, energy.shape, 1)
        energy = jnp.where(lane < n_valid, energy, -1e30)

    # --- exact, numerically stable softmax over the resident key axis (f32).
    m = jnp.max(energy, axis=-1, keepdims=True)
    p = jnp.exp(energy - m)
    inv = pl.reciprocal(jnp.sum(p, axis=-1, keepdims=True), approx=False)
    att_ref[...] = (p * inv).astype(att_ref.dtype)

    # --- out[i, c] = sum_m att[i, m] * v[m, c]   (torch: bmm(V, att^T))
    # Feed the AV matmul from att_ref (bf16) so no extra (TQ, Np) temp stays live.
    out = jnp.dot(att_ref[...], v_sc[...],
                  preferred_element_type=jnp.float32)                  # (TQ, C) f32
    out_ref[...] = gamma_ref[0] * out + xres_ref[...]                  # exact residual


def _pick_tile_and_vmem(npad, c, ch):
    """Generation-aware query-tile size + VMEM limit (v5e/v6e: 128 MiB, v7x: 64 MiB)."""
    try:
        vmem_cap = int(pltpu.get_tpu_info().vmem_capacity_bytes)
    except Exception:
        vmem_cap = 64 * 1024 * 1024           # conservative fallback: v7x per-core VMEM
    vmem_limit = min(vmem_cap // 2, 96 * 1024 * 1024)

    def working_set(tq):
        return (2 * npad * c * 2              # bf16 x block (double-buffered)
                + 2 * tq * c * 4              # f32 residual tile (double-buffered)
                + (ch + c) * npad * 2         # kT / v bf16 scratch
                + (ch + c) * npad * 4         # f32 projection temporaries at j == 0
                + 3 * tq * npad * 4           # energy / softmax f32 temporaries
                + 2 * tq * npad * 2           # bf16 attention block (double-buffered)
                + 2 * tq * c * 4              # out block (double-buffered)
                + (1 << 20))                  # weights / q tile / headroom

    for tq in (512, 256, 128):
        if npad % tq == 0 and working_set(tq) <= int(0.9 * vmem_limit):
            return tq, vmem_limit
    # TODO(synk): for very large N (~8k+ positions) a key-tiled (flash-style)
    # variant is needed to stay inside v7x's 64 MiB VMEM; here we fall back to
    # the smallest lane-dense query tile.
    return 128, vmem_limit


def self_attn(x, wq, bq, wk, bk, wv, bv, gamma, *, att_dtype=jnp.bfloat16):
    """x: (B, C, W, H) float32. Returns (out: (B, C, W, H) f32, attention: (B, N, N))."""
    B, C, W, H = x.shape
    N = W * H
    Ch = wq.shape[0]
    Np = ((N + 127) // 128) * 128            # lane-dense key / attention axis
    TQ, vmem_limit = _pick_tile_and_vmem(Np, C, Ch)

    # Sequence-major layout (layout plumbing only), zero-padded to Np positions.
    xT = x.reshape(B, C, N).transpose(0, 2, 1).astype(jnp.float32)    # (B, N, C)
    if Np != N:
        xT = jnp.pad(xT, ((0, 0), (0, Np - N), (0, 0)))
    x_bf16 = xT.astype(jnp.bfloat16)                                  # matmul operand

    wqT_b = jnp.asarray(wq, jnp.float32).T.astype(jnp.bfloat16)       # (C, Ch)
    wk_b = jnp.asarray(wk, jnp.float32).astype(jnp.bfloat16)          # (Ch, C)
    wvT_b = jnp.asarray(wv, jnp.float32).T.astype(jnp.bfloat16)       # (C, C)
    bq_row = jnp.asarray(bq, jnp.float32).reshape(1, Ch)
    bk_col = jnp.asarray(bk, jnp.float32).reshape(Ch, 1)
    bv_row = jnp.asarray(bv, jnp.float32).reshape(1, C)
    gamma1 = jnp.asarray(gamma, jnp.float32).reshape(1)

    def rep(shape):
        # weights / biases: full array, replicated across the (b, j) grid
        return pl.BlockSpec(shape, lambda b, j: tuple(0 for _ in shape))

    kernel = functools.partial(self_attn_kernel, N)

    out_nc, att = pl.pallas_call(
        kernel,
        out_shape=(jax.ShapeDtypeStruct((B, Np, C), jnp.float32),
                   jax.ShapeDtypeStruct((B, Np, Np), att_dtype)),
        grid_spec=pltpu.PrefetchScalarGridSpec(
            num_scalar_prefetch=0,
            grid=(B, Np // TQ),
            in_specs=[
                pl.BlockSpec((None, Np, C), lambda b, j: (b, 0, 0)),   # x bf16, full seq
                pl.BlockSpec((None, TQ, C), lambda b, j: (b, j, 0)),   # x f32, residual tile
                rep((C, Ch)), rep((1, Ch)),                            # Wq^T, bq
                rep((Ch, C)), rep((Ch, 1)),                            # Wk,   bk
                rep((C, C)), rep((1, C)),                              # Wv^T, bv
                pl.BlockSpec(memory_space=pltpu.MemorySpace.SMEM),     # gamma scalar
            ],
            out_specs=(
                pl.BlockSpec((None, TQ, C), lambda b, j: (b, j, 0)),   # out (seq-major)
                pl.BlockSpec((None, TQ, Np), lambda b, j: (b, j, 0)),  # attention
            ),
            scratch_shapes=[
                pltpu.VMEM((Ch, Np), jnp.bfloat16),   # K^T, persists across query tiles
                pltpu.VMEM((Np, C), jnp.bfloat16),    # V,   persists across query tiles
            ],
        ),
        compiler_params=pltpu.CompilerParams(
            # Batch axis may shard across TensorCores; the query-tile axis must
            # stay sequential because the K/V scratch is carried across it.
            dimension_semantics=("parallel", "arbitrary"),
            vmem_limit_bytes=vmem_limit,
        ),
    )(x_bf16, xT, wqT_b, bq_row, wk_b, bk_col, wvT_b, bv_row, gamma1)

    out = out_nc[:, :N, :].transpose(0, 2, 1).reshape(B, C, W, H)
    att = att[:, :N, :N]
    return out, att


def self_attn_ref(x, wq, bq, wk, bk, wv, bv, gamma):
    """Pure-JAX f32 reference mirroring the PyTorch forward."""
    B, C, W, H = x.shape
    N = W * H
    xf = x.reshape(B, C, N)
    q = jnp.einsum('oc,bcn->bon', wq, xf) + bq[None, :, None]   # (B, Ch, N)
    k = jnp.einsum('oc,bcn->bon', wk, xf) + bk[None, :, None]
    v = jnp.einsum('oc,bcn->bon', wv, xf) + bv[None, :, None]
    energy = jnp.einsum('bcn,bcm->bnm', q, k)                   # (B, N, N)
    att = jax.nn.softmax(energy, axis=-1)
    out = jnp.einsum('bcn,bmn->bcm', v, att)                    # (B, C, N)
    out = gamma * out + xf
    return out.reshape(B, C, W, H), att


if __name__ == "__main__":
    cases = [
        dict(B=2, C=4, hidden_ratio=2, W=16, H=16),   # N=256, single query tile
        dict(B=2, C=8, hidden_ratio=2, W=32, H=32),   # N=1024, multiple query tiles (scratch reuse)
        dict(B=1, C=4, hidden_ratio=2, W=10, H=10),   # N=100 -> padded/masked key axis
    ]

    key = jax.random.PRNGKey(0)
    fn = jax.jit(self_attn)

    for cfg in cases:
        B, C, W, H = cfg["B"], cfg["C"], cfg["W"], cfg["H"]
        Ch = C // cfg["hidden_ratio"]
        key, kx, kq, kbq, kk, kbk, kv_, kbv = jax.random.split(key, 8)

        x = jax.random.normal(kx, (B, C, W, H), jnp.float32)
        # Conv2d(k=1) weights: (out_ch, in_ch, 1, 1) -> stored as (out_ch, in_ch)
        wq = jax.random.normal(kq, (Ch, C), jnp.float32) * 0.1
        bq = jax.random.normal(kbq, (Ch,), jnp.float32) * 0.1
        wk = jax.random.normal(kk, (Ch, C), jnp.float32) * 0.1
        bk = jax.random.normal(kbk, (Ch,), jnp.float32) * 0.1
        wv = jax.random.normal(kv_, (C, C), jnp.float32) * 0.1
        bv = jax.random.normal(kbv, (C,), jnp.float32) * 0.1
        gamma = jnp.full((1,), 0.5, jnp.float32)   # nonzero to exercise the attention path

        out, att = fn(x, wq, bq, wk, bk, wv, bv, gamma)
        out, att = jax.block_until_ready((out, att))

        out_r, att_r = self_attn_ref(x, wq, bq, wk, bk, wv, bv, gamma)
        N = W * H
        assert out.shape == (B, C, W, H) and att.shape == (B, N, N)
        # bf16 MXU operands / bf16 attention output -> compare at bf16-level tolerance.
        assert jnp.allclose(out, out_r, atol=1e-2, rtol=1e-2), (
            f"out mismatch: {jnp.max(jnp.abs(out - out_r))}")
        assert jnp.allclose(att.astype(jnp.float32), att_r, atol=1e-2, rtol=1e-2), (
            f"att mismatch: {jnp.max(jnp.abs(att.astype(jnp.float32) - att_r))}")

    print("KERNEL_OK")
</pallas_src>

<mosaic_0001>
module attributes {stable_mosaic.version = 11 : i64} {
  func.func @self_attn_kernel(%arg0: i32, %arg1: i32, %arg2: memref<1x256x4xbf16, #tpu.memory_space<vmem>>, %arg3: memref<1x256x4xf32, #tpu.memory_space<vmem>>, %arg4: memref<4x2xbf16, #tpu.memory_space<vmem>>, %arg5: memref<1x2xf32, #tpu.memory_space<vmem>>, %arg6: memref<2x4xbf16, #tpu.memory_space<vmem>>, %arg7: memref<2x1xf32, #tpu.memory_space<vmem>>, %arg8: memref<4x4xbf16, #tpu.memory_space<vmem>>, %arg9: memref<1x4xf32, #tpu.memory_space<vmem>>, %arg10: memref<1xf32, #tpu.memory_space<smem>>, %arg11: memref<1x256x4xf32, #tpu.memory_space<vmem>>, %arg12: memref<1x256x256xbf16, #tpu.memory_space<vmem>>, %arg13: memref<2x256xbf16, #tpu.memory_space<vmem>>, %arg14: memref<256x4xbf16, #tpu.memory_space<vmem>>) attributes {dimension_semantics = [#tpu.dimension_semantics<parallel>, #tpu.dimension_semantics<arbitrary>], iteration_bounds = array<i64: 2, 1>, scalar_prefetch = 0 : i64, scratch_operands = 2 : i64, tpu.core_type = #tpu.core_type<tc>, window_params = [{transform_indices = @transform_0, window_bounds = array<i64: 1, 256, 4>}, {transform_indices = @transform_1, window_bounds = array<i64: 1, 256, 4>}, {pipeline_mode = #tpu.pipeline_mode<synchronous>, transform_indices = @transform_2, window_bounds = array<i64: 4, 2>}, {pipeline_mode = #tpu.pipeline_mode<synchronous>, transform_indices = @transform_3, window_bounds = array<i64: 1, 2>}, {pipeline_mode = #tpu.pipeline_mode<synchronous>, transform_indices = @transform_4, window_bounds = array<i64: 2, 4>}, {pipeline_mode = #tpu.pipeline_mode<synchronous>, transform_indices = @transform_5, window_bounds = array<i64: 2, 1>}, {pipeline_mode = #tpu.pipeline_mode<synchronous>, transform_indices = @transform_6, window_bounds = array<i64: 4, 4>}, {pipeline_mode = #tpu.pipeline_mode<synchronous>, transform_indices = @transform_7, window_bounds = array<i64: 1, 4>}, {transform_indices = @transform_8, window_bounds = array<i64: 1>}, {transform_indices = @transform_9, window_bounds = array<i64: 1, 256, 4>}, {transform_indices = @transform_10, window_bounds = array<i64: 1, 256, 256>}]} {
    %c0_i32 = arith.constant 0 : i32
    %0 = arith.cmpi eq, %arg1, %c0_i32 : i32
    %1 = arith.extui %0 : i1 to i32
    %c0_i32_0 = arith.constant 0 : i32
    %2 = arith.cmpi ne, %1, %c0_i32_0 : i32
    scf.if %2 {
      %c0_27 = arith.constant 0 : index
      %c0_28 = arith.constant 0 : index
      %c0_29 = arith.constant 0 : index
      %43 = vector.load %arg2[%c0_27, %c0_28, %c0_29] : memref<1x256x4xbf16, #tpu.memory_space<vmem>>, vector<1x256x4xbf16>
      %44 = vector.shape_cast %43 : vector<1x256x4xbf16> to vector<256x4xbf16>
      %c0_30 = arith.constant 0 : index
      %c0_31 = arith.constant 0 : index
      %45 = vector.load %arg8[%c0_30, %c0_31] : memref<4x4xbf16, #tpu.memory_space<vmem>>, vector<4x4xbf16>
      %cst_32 = arith.constant dense<0.000000e+00> : vector<256x4xf32>
      %46 = tpu.matmul %44, %45, %cst_32 {dimension_numbers = #tpu.dot_dimension_numbers<[1], [0], [0], [1], [0, 0, 1, 1], [], []>} : vector<256x4xbf16>, vector<4x4xbf16>, vector<256x4xf32> -> vector<256x4xf32>
      %c0_33 = arith.constant 0 : index
      %c0_34 = arith.constant 0 : index
      %47 = vector.load %arg9[%c0_33, %c0_34] : memref<1x4xf32, #tpu.memory_space<vmem>>, vector<1x4xf32>
      %48 = vector.broadcast %47 : vector<1x4xf32> to vector<256x4xf32>
      %49 = arith.addf %46, %48 : vector<256x4xf32>
      %50 = arith.truncf %49 : vector<256x4xf32> to vector<256x4xbf16>
      %c0_35 = arith.constant 0 : index
      %c0_36 = arith.constant 0 : index
      %51 = vector.load %arg14[%c0_35, %c0_36] : memref<256x4xbf16, #tpu.memory_space<vmem>>, vector<256x4xbf16>
      tpu.vector_store %arg14[%c0_35, %c0_36], %50 {strides = array<i32>} : memref<256x4xbf16, #tpu.memory_space<vmem>>, vector<256x4xbf16>,
      %c0_37 = arith.constant 0 : index
      %c0_38 = arith.constant 0 : index
      %52 = vector.load %arg6[%c0_37, %c0_38] : memref<2x4xbf16, #tpu.memory_space<vmem>>, vector<2x4xbf16>
      %cst_39 = arith.constant dense<0.000000e+00> : vector<2x256xf32>
      %53 = tpu.matmul %52, %44, %cst_39 {dimension_numbers = #tpu.dot_dimension_numbers<[1], [1], [0], [0], [0, 0, 1, 0], [], []>} : vector<2x4xbf16>, vector<256x4xbf16>, vector<2x256xf32> -> vector<2x256xf32>
      %c0_40 = arith.constant 0 : index
      %c0_41 = arith.constant 0 : index
      %54 = vector.load %arg7[%c0_40, %c0_41] : memref<2x1xf32, #tpu.memory_space<vmem>>, vector<2x1xf32>
      %55 = vector.broadcast %54 : vector<2x1xf32> to vector<2x256xf32>
      %56 = arith.addf %53, %55 : vector<2x256xf32>
      %57 = arith.truncf %56 : vector<2x256xf32> to vector<2x256xbf16>
      %c0_42 = arith.constant 0 : index
      %c0_43 = arith.constant 0 : index
      %58 = vector.load %arg13[%c0_42, %c0_43] : memref<2x256xbf16, #tpu.memory_space<vmem>>, vector<2x256xbf16>
      tpu.vector_store %arg13[%c0_42, %c0_43], %57 {strides = array<i32>} : memref<2x256xbf16, #tpu.memory_space<vmem>>, vector<2x256xbf16>,
    } else {
    }
    %c256_i32 = arith.constant 256 : i32
    %3 = arith.muli %arg1, %c256_i32 : i32
    %4 = tpu.assume_multiple %3, 256 : i32
    %c0 = arith.constant 0 : index
    %5 = arith.index_cast %4 : i32 to index
    %c0_1 = arith.constant 0 : index
    %6 = vector.load %arg2[%c0, %5, %c0_1] : memref<1x256x4xbf16, #tpu.memory_space<vmem>>, vector<1x256x4xbf16>
    %7 = vector.shape_cast %6 : vector<1x256x4xbf16> to vector<256x4xbf16>
    %c0_2 = arith.constant 0 : index
    %c0_3 = arith.constant 0 : index
    %8 = vector.load %arg4[%c0_2, %c0_3] : memref<4x2xbf16, #tpu.memory_space<vmem>>, vector<4x2xbf16>
    %cst = arith.constant dense<0.000000e+00> : vector<256x2xf32>
    %9 = tpu.matmul %7, %8, %cst {dimension_numbers = #tpu.dot_dimension_numbers<[1], [0], [0], [1], [0, 0, 1, 1], [], []>} : vector<256x4xbf16>, vector<4x2xbf16>, vector<256x2xf32> -> vector<256x2xf32>
    %c0_4 = arith.constant 0 : index
    %c0_5 = arith.constant 0 : index
    %10 = vector.load %arg5[%c0_4, %c0_5] : memref<1x2xf32, #tpu.memory_space<vmem>>, vector<1x2xf32>
    %11 = vector.broadcast %10 : vector<1x2xf32> to vector<256x2xf32>
    %12 = arith.addf %9, %11 : vector<256x2xf32>
    %13 = arith.truncf %12 : vector<256x2xf32> to vector<256x2xbf16>
    %c0_6 = arith.constant 0 : index
    %c0_7 = arith.constant 0 : index
    %14 = vector.load %arg13[%c0_6, %c0_7] : memref<2x256xbf16, #tpu.memory_space<vmem>>, vector<2x256xbf16>
    %cst_8 = arith.constant dense<0.000000e+00> : vector<256x256xf32>
    %15 = tpu.matmul %13, %14, %cst_8 {dimension_numbers = #tpu.dot_dimension_numbers<[1], [0], [0], [1], [0, 0, 1, 1], [], []>} : vector<256x2xbf16>, vector<2x256xbf16>, vector<256x256xf32> -> vector<256x256xf32>
    %cst_9 = arith.constant dense<0xFF800000> : vector<256xf32>
    %16 = vector.multi_reduction <maximumf>, %15, %cst_9 [1] : vector<256x256xf32> to vector<256xf32>
    %17 = vector.shape_cast %16 : vector<256xf32> to vector<256x1xf32>
    %18 = vector.broadcast %17 : vector<256x1xf32> to vector<256x256xf32>
    %19 = arith.subf %15, %18 : vector<256x256xf32>
    %20 = math.exp %19 : vector<256x256xf32>
    %cst_10 = arith.constant dense<0.000000e+00> : vector<256xf32>
    %21 = vector.multi_reduction <add>, %20, %cst_10 [1] : vector<256x256xf32> to vector<256xf32>
    %22 = vector.shape_cast %21 : vector<256xf32> to vector<256x1xf32>
    %23 = tpu.reciprocal %22 : vector<256x1xf32> -> vector<256x1xf32>
    %24 = vector.broadcast %23 : vector<256x1xf32> to vector<256x256xf32>
    %25 = arith.mulf %20, %24 : vector<256x256xf32>
    %26 = arith.truncf %25 : vector<256x256xf32> to vector<256x256xbf16>
    %c0_11 = arith.constant 0 : index
    %c0_12 = arith.constant 0 : index
    %c0_13 = arith.constant 0 : index
    %27 = vector.load %arg12[%c0_11, %c0_12, %c0_13] : memref<1x256x256xbf16, #tpu.memory_space<vmem>>, vector<1x256x256xbf16>
    %28 = vector.shape_cast %27 : vector<1x256x256xbf16> to vector<256x256xbf16>
    %29 = vector.shape_cast %26 : vector<256x256xbf16> to vector<1x256x256xbf16>
    tpu.vector_store %arg12[%c0_11, %c0_12, %c0_13], %29 {strides = array<i32>} : memref<1x256x256xbf16, #tpu.memory_space<vmem>>, vector<1x256x256xbf16>,
    %c0_14 = arith.constant 0 : index
    %c0_15 = arith.constant 0 : index
    %c0_16 = arith.constant 0 : index
    %30 = vector.load %arg12[%c0_14, %c0_15, %c0_16] : memref<1x256x256xbf16, #tpu.memory_space<vmem>>, vector<1x256x256xbf16>
    %31 = vector.shape_cast %30 : vector<1x256x256xbf16> to vector<256x256xbf16>
    %c0_17 = arith.constant 0 : index
    %c0_18 = arith.constant 0 : index
    %32 = vector.load %arg14[%c0_17, %c0_18] : memref<256x4xbf16, #tpu.memory_space<vmem>>, vector<256x4xbf16>
    %cst_19 = arith.constant dense<0.000000e+00> : vector<256x4xf32>
    %33 = tpu.matmul %31, %32, %cst_19 {dimension_numbers = #tpu.dot_dimension_numbers<[1], [0], [0], [1], [0, 0, 1, 1], [], []>} : vector<256x256xbf16>, vector<256x4xbf16>, vector<256x4xf32> -> vector<256x4xf32>
    %c0_20 = arith.constant 0 : index
    %34 = memref.load %arg10[%c0_20] : memref<1xf32, #tpu.memory_space<smem>>
    %35 = vector.broadcast %34 : f32 to vector<256x4xf32>
    %36 = arith.mulf %35, %33 : vector<256x4xf32>
    %c0_21 = arith.constant 0 : index
    %c0_22 = arith.constant 0 : index
    %c0_23 = arith.constant 0 : index
    %37 = vector.load %arg3[%c0_21, %c0_22, %c0_23] : memref<1x256x4xf32, #tpu.memory_space<vmem>>, vector<1x256x4xf32>
    %38 = vector.shape_cast %37 : vector<1x256x4xf32> to vector<256x4xf32>
    %39 = arith.addf %36, %38 : vector<256x4xf32>
    %c0_24 = arith.constant 0 : index
    %c0_25 = arith.constant 0 : index
    %c0_26 = arith.constant 0 : index
    %40 = vector.load %arg11[%c0_24, %c0_25, %c0_26] : memref<1x256x4xf32, #tpu.memory_space<vmem>>, vector<1x256x4xf32>
    %41 = vector.shape_cast %40 : vector<1x256x4xf32> to vector<256x4xf32>
    %42 = vector.shape_cast %39 : vector<256x4xf32> to vector<1x256x4xf32>
    tpu.vector_store %arg11[%c0_24, %c0_25, %c0_26], %42 {strides = array<i32>} : memref<1x256x4xf32, #tpu.memory_space<vmem>>, vector<1x256x4xf32>,
    return
  }
  func.func @transform_0(%arg0: i32, %arg1: i32) -> (i32, i32, i32) {
    %c0_i32 = arith.constant 0 : i32
    %c0_i32_0 = arith.constant 0 : i32
    %c0_i32_1 = arith.constant 0 : i32
    return %arg0, %c0_i32, %c0_i32_0 : i32, i32, i32
  }
  func.func @transform_1(%arg0: i32, %arg1: i32) -> (i32, i32, i32) {
    %c0_i32 = arith.constant 0 : i32
    %c0_i32_0 = arith.constant 0 : i32
    return %arg0, %arg1, %c0_i32 : i32, i32, i32
  }
  func.func @transform_2(%arg0: i32, %arg1: i32) -> (i32, i32) {
    %c0_i32 = arith.constant 0 : i32
    %c0_i32_0 = arith.constant 0 : i32
    %c0_i32_1 = arith.constant 0 : i32
    return %c0_i32, %c0_i32_0 : i32, i32
  }
  func.func @transform_3(%arg0: i32, %arg1: i32) -> (i32, i32) {
    %c0_i32 = arith.constant 0 : i32
    %c0_i32_0 = arith.constant 0 : i32
    %c0_i32_1 = arith.constant 0 : i32
    return %c0_i32, %c0_i32_0 : i32, i32
  }
  func.func @transform_4(%arg0: i32, %arg1: i32) -> (i32, i32) {
    %c0_i32 = arith.constant 0 : i32
    %c0_i32_0 = arith.constant 0 : i32
    %c0_i32_1 = arith.constant 0 : i32
    return %c0_i32, %c0_i32_0 : i32, i32
  }
  func.func @transform_5(%arg0: i32, %arg1: i32) -> (i32, i32) {
    %c0_i32 = arith.constant 0 : i32
    %c0_i32_0 = arith.constant 0 : i32
    %c0_i32_1 = arith.constant 0 : i32
    return %c0_i32, %c0_i32_0 : i32, i32
  }
  func.func @transform_6(%arg0: i32, %arg1: i32) -> (i32, i32) {
    %c0_i32 = arith.constant 0 : i32
    %c0_i32_0 = arith.constant 0 : i32
    %c0_i32_1 = arith.constant 0 : i32
    return %c0_i32, %c0_i32_0 : i32, i32
  }
  func.func @transform_7(%arg0: i32, %arg1: i32) -> (i32, i32) {
    %c0_i32 = arith.constant 0 : i32
    %c0_i32_0 = arith.constant 0 : i32
    %c0_i32_1 = arith.constant 0 : i32
    return %c0_i32, %c0_i32_0 : i32, i32
  }
  func.func @transform_8(%arg0: i32, %arg1: i32) -> i32 {
    %c0_i32 = arith.constant 0 : i32
    %c0_i32_0 = arith.constant 0 : i32
    return %c0_i32 : i32
  }
  func.func @transform_9(%arg0: i32, %arg1: i32) -> (i32, i32, i32) {
    %c0_i32 = arith.constant 0 : i32
    %c0_i32_0 = arith.constant 0 : i32
    return %arg0, %arg1, %c0_i32 : i32, i32, i32
  }
  func.func @transform_10(%arg0: i32, %arg1: i32) -> (i32, i32, i32) {
    %c0_i32 = arith.constant 0 : i32
    %c0_i32_0 = arith.constant 0 : i32
    return %arg0, %arg1, %c0_i32 : i32, i32, i32
  }
}

</mosaic_0001>

<llo_original>
// kernel: self_attn.1
$region0: #{self_attn.1}
  #allocation0 [shape = 'u32[]', space=smem, size = 0x4, offset = 0x4, fixed_abs, tag = 'smem constant byte address 0x4 - core index']
  #allocation1 [shape = 'u32[72,128]{1,0:T(1,128)}', space=vmem, size = 0x9000, scoped, tag = 'internal scratch']
  #allocation2 [shape = 'bf16[2,256]{1,0:T(2,128)(2,1)}', space=vmem, size = 0x400, scoped, tag = 'scratch operand']
  #allocation3 [shape = 'bf16[256,4]{1,0:T(8,128)(2,1)}', space=vmem, size = 0x10000, scoped, tag = 'scratch operand']
  #allocation4 [shape = 'f32[1]{0:T(128)S(6)}', space=smem, size = 0x200, scoped, tag = 'scoped memory for self_attn.1']
  %s0 = inlined_call_operand.vmem [shape: bf16[2,256,4], index: 0, kind: input, shape index: {}]
  %s1 = inlined_call_operand.vmem [shape: f32[2,256,4], index: 1, kind: input, shape index: {}]
  %s2 = inlined_call_operand.vmem [shape: bf16[4,2], index: 2, kind: input, shape index: {}]
  %s3 = inlined_call_operand.vmem [shape: f32[1,2], index: 3, kind: input, shape index: {}]
  %s4 = inlined_call_operand.vmem [shape: bf16[2,4], index: 4, kind: input, shape index: {}]
  %s5 = inlined_call_operand.vmem [shape: f32[2,1], index: 5, kind: input, shape index: {}]
  %s6 = inlined_call_operand.vmem [shape: bf16[4,4], index: 6, kind: input, shape index: {}]
  %s7 = inlined_call_operand.vmem [shape: f32[1,4], index: 7, kind: input, shape index: {}]
  %s8 = inlined_call_operand.<no memory space> [shape: f32[1], index: 8, kind: input, shape index: {}]
  %s9 = inlined_call_operand.vmem [shape: f32[2,256,4], index: 9, kind: output, shape index: {0}]
  %s10 = inlined_call_operand.hbm [shape: bf16[2,256,256], index: 10, kind: output, shape index: {1}]
  %11 = xla_tuple %s9, %s10
  %s12 = sld [smem:[#allocation0]]
  $region81: #{self_attn.1} parent=0
    _
  %s14 = ssub.s32 1, %s12
  %s15 = scalar_select 0, %s14, %s12
  %16 = sst [smem:[#allocation4]] %s8
  $region1: #{self_attn.1} parent=0
    #allocation5 [shape = 'u8[262144]{0}', space=vmem, size = 0x40000, scoped, tag = 'output window, operand 1']
    #allocation6 [shape = 's32[2]{0}', space=sflag, size = 0x8, scoped, tag = 'scoped memory for self_attn.1']
    %17 = vsyncpa [#allocation6], 0
    %s18 = scalar_lea.sflag [#allocation6], 1
    %19 = vsyncpa %s18, 0
    loop: start=0, step=1, limit=4
    $region2: #{self_attn.1} parent=1 // loop_pre_header
      _
    $region3: #{self_attn.1} parent=1 // loop_header
      %s21 = sphi 0, %s25
      %p22 = scmp.ge.s32.totalorder %s21, 4
      %s28 = sphi 0, %s40
      %s29 = sphi 0, %s36
      %s30 = sphi 0, %s28
      %s31 = sphi 0, %s29
      %s32 = sphi 0, %s30
      %s33 = sphi 0, %s31
      %s43 = sphi 0, %s45
      %s46 = sphi 0, %s43
      %s47 = sphi 0, %s46
      %s63 = sphi 0, %s47
      %s71 = sphi 0, %s73
      %s74 = sphi 0, %s71
      %s75 = sphi 0, %s74
      %s91 = sphi 0, %s75
      %s95 = sphi 0, %s95
      %s97 = sphi 0, %s95
      %s98 = sphi 0, %s97
      %s112 = sphi 0, %s98
      %s116 = sphi 0, %s116
      %s118 = sphi 0, %s116
      %s119 = sphi 0, %s118
      %s133 = sphi 0, %s119
      %s137 = sphi 0, %s137
      %s139 = sphi 0, %s137
      %s140 = sphi 0, %s139
      %s154 = sphi 0, %s140
      %s158 = sphi 0, %s158
      %s160 = sphi 0, %s158
      %s161 = sphi 0, %s160
      %s175 = sphi 0, %s161
      %s179 = sphi 0, %s179
      %s181 = sphi 0, %s179
      %s182 = sphi 0, %s181
      %s196 = sphi 0, %s182
      %s200 = sphi 0, %s200
      %s202 = sphi 0, %s200
      %s203 = sphi 0, %s202
      %s217 = sphi 0, %s203
      %s221 = sphi 0, %s221
      %s223 = sphi 0, %s221
      %s224 = sphi 0, %s223
      %s238 = sphi 0, %s224
      %s246 = sphi 0, %s248
      %s249 = sphi 0, %s246
      %s250 = sphi 0, %s249
      %s266 = sphi 0, %s250
      %s274 = sphi 0, %s276
      %s277 = sphi 0, %s274
      %s278 = sphi 0, %s277
      %s294 = sphi 0, %s278
    $region4: #{self_attn.1} parent=1 // loop_header_branch
      %24 = sbr.rel (%p22) target = $region8
    $region5: #{self_attn.1} parent=1 // loop_body
      %s26 = ssub.s32 %s21, 1
      %s27 = ssub.s32 %s21, 2
      %s34 = sadd.s32 1, %s29
      %p35 = scmp.ge.s32.totalorder %s34, 1
      %s36 = scalar_select %p35, 0, %s34
      %s37 = sadd.s32 1, %s28
      %s38 = scalar_select %p35, %s37, %s28
      %p39 = scmp.ge.s32.totalorder %s38, 2
      %s40 = scalar_select %p39, 0, %s38
      %s41 = ssub.s32 %s28, %s40
      %p42 = scmp.eq.s32.totalorder %s41, 0
      %s44 = sadd.s32 %s43, 1
      %s45 = scalar_select %p42, %s43, %s44
      %p48 = pneg %p42
      %p49 = scmp.eq.s32.totalorder %s21, 1
      %p50 = por %p48, %p49
      %p51 = scmp.ne.s32.totalorder %s43, %s46
      %p52 = scmp.eq.s32.totalorder %s21, 0
      %p53 = por %p51, %p52
      %p54 = scmp.ne.s32.totalorder %s43, %s46
      %p55 = scmp.eq.s32.totalorder %s26, 1
      %p56 = por %p54, %p55
      %p57 = scmp.ne.s32.totalorder %s46, %s47
      %p58 = scmp.eq.s32.totalorder %s26, 0
      %p59 = por %p57, %p58
      %p60 = scmp.ne.s32.totalorder %s46, %s47
      %p61 = scmp.eq.s32.totalorder %s27, 1
      %p62 = por %p60, %p61
      %p64 = scmp.ne.s32.totalorder %s47, %s63
      %p65 = scmp.eq.s32.totalorder %s27, 0
      %p66 = por %p64, %p65
      %s67 = ssub.s32 %s28, %s40
      %s68 = ssub.s32 %s29, %s36
      %s69 = sor.u32 %s67, %s68
      %p70 = scmp.eq.s32.totalorder %s69, 0
      %s72 = sadd.s32 %s71, 1
      %s73 = scalar_select %p70, %s71, %s72
      %p76 = pneg %p70
      %p77 = scmp.eq.s32.totalorder %s21, 1
      %p78 = por %p76, %p77
      %p79 = scmp.ne.s32.totalorder %s71, %s74
      %p80 = scmp.eq.s32.totalorder %s21, 0
      %p81 = por %p79, %p80
      %p82 = scmp.ne.s32.totalorder %s71, %s74
      %p83 = scmp.eq.s32.totalorder %s26, 1
      %p84 = por %p82, %p83
      %p85 = scmp.ne.s32.totalorder %s74, %s75
      %p86 = scmp.eq.s32.totalorder %s26, 0
      %p87 = por %p85, %p86
      %p88 = scmp.ne.s32.totalorder %s74, %s75
      %p89 = scmp.eq.s32.totalorder %s27, 1
      %p90 = por %p88, %p89
      %p92 = scmp.ne.s32.totalorder %s75, %s91
      %p93 = scmp.eq.s32.totalorder %s27, 0
      %p94 = por %p92, %p93
      %s96 = sadd.s32 %s95, 1
      %p99 = scmp.eq.s32.totalorder %s21, 1
      %p100 = scmp.ne.s32.totalorder %s95, %s97
      %p101 = scmp.eq.s32.totalorder %s21, 0
      %p102 = por %p100, %p101
      %p103 = scmp.ne.s32.totalorder %s95, %s97
      %p104 = scmp.eq.s32.totalorder %s26, 1
      %p105 = por %p103, %p104
      %p106 = scmp.ne.s32.totalorder %s97, %s98
      %p107 = scmp.eq.s32.totalorder %s26, 0
      %p108 = por %p106, %p107
      %p109 = scmp.ne.s32.totalorder %s97, %s98
      %p110 = scmp.eq.s32.totalorder %s27, 1
      %p111 = por %p109, %p110
      %p113 = scmp.ne.s32.totalorder %s98, %s112
      %p114 = scmp.eq.s32.totalorder %s27, 0
      %p115 = por %p113, %p114
      %s117 = sadd.s32 %s116, 1
      %p120 = scmp.eq.s32.totalorder %s21, 1
      %p121 = scmp.ne.s32.totalorder %s116, %s118
      %p122 = scmp.eq.s32.totalorder %s21, 0
      %p123 = por %p121, %p122
      %p124 = scmp.ne.s32.totalorder %s116, %s118
      %p125 = scmp.eq.s32.totalorder %s26, 1
      %p126 = por %p124, %p125
      %p127 = scmp.ne.s32.totalorder %s118, %s119
      %p128 = scmp.eq.s32.totalorder %s26, 0
      %p129 = por %p127, %p128
      %p130 = scmp.ne.s32.totalorder %s118, %s119
      %p131 = scmp.eq.s32.totalorder %s27, 1
      %p132 = por %p130, %p131
      %p134 = scmp.ne.s32.totalorder %s119, %s133
      %p135 = scmp.eq.s32.totalorder %s27, 0
      %p136 = por %p134, %p135
      %s138 = sadd.s32 %s137, 1
      %p141 = scmp.eq.s32.totalorder %s21, 1
      %p142 = scmp.ne.s32.totalorder %s137, %s139
      %p143 = scmp.eq.s32.totalorder %s21, 0
      %p144 = por %p142, %p143
      %p145 = scmp.ne.s32.totalorder %s137, %s139
      %p146 = scmp.eq.s32.totalorder %s26, 1
      %p147 = por %p145, %p146
      %p148 = scmp.ne.s32.totalorder %s139, %s140
      %p149 = scmp.eq.s32.totalorder %s26, 0
      %p150 = por %p148, %p149
      %p151 = scmp.ne.s32.totalorder %s139, %s140
      %p152 = scmp.eq.s32.totalorder %s27, 1
      %p153 = por %p151, %p152
      %p155 = scmp.ne.s32.totalorder %s140, %s154
      %p156 = scmp.eq.s32.totalorder %s27, 0
      %p157 = por %p155, %p156
      %s159 = sadd.s32 %s158, 1
      %p162 = scmp.eq.s32.totalorder %s21, 1
      %p163 = scmp.ne.s32.totalorder %s158, %s160
      %p164 = scmp.eq.s32.totalorder %s21, 0
      %p165 = por %p163, %p164
      %p166 = scmp.ne.s32.totalorder %s158, %s160
      %p167 = scmp.eq.s32.totalorder %s26, 1
      %p168 = por %p166, %p167
      %p169 = scmp.ne.s32.totalorder %s160, %s161
      %p170 = scmp.eq.s32.totalorder %s26, 0
      %p171 = por %p169, %p170
      %p172 = scmp.ne.s32.totalorder %s160, %s161
      %p173 = scmp.eq.s32.totalorder %s27, 1
      %p174 = por %p172, %p173
      %p176 = scmp.ne.s32.totalorder %s161, %s175
      %p177 = scmp.eq.s32.totalorder %s27, 0
      %p178 = por %p176, %p177
      %s180 = sadd.s32 %s179, 1
      %p183 = scmp.eq.s32.totalorder %s21, 1
      %p184 = scmp.ne.s32.totalorder %s179, %s181
      %p185 = scmp.eq.s32.totalorder %s21, 0
      %p186 = por %p184, %p185
      %p187 = scmp.ne.s32.totalorder %s179, %s181
      %p188 = scmp.eq.s32.totalorder %s26, 1
      %p189 = por %p187, %p188
      %p190 = scmp.ne.s32.totalorder %s181, %s182
      %p191 = scmp.eq.s32.totalorder %s26, 0
      %p192 = por %p190, %p191
      %p193 = scmp.ne.s32.totalorder %s181, %s182
      %p194 = scmp.eq.s32.totalorder %s27, 1
      %p195 = por %p193, %p194
      %p197 = scmp.ne.s32.totalorder %s182, %s196
      %p198 = scmp.eq.s32.totalorder %s27, 0
      %p199 = por %p197, %p198
      %s201 = sadd.s32 %s200, 1
      %p204 = scmp.eq.s32.totalorder %s21, 1
      %p205 = scmp.ne.s32.totalorder %s200, %s202
      %p206 = scmp.eq.s32.totalorder %s21, 0
      %p207 = por %p205, %p206
      %p208 = scmp.ne.s32.totalorder %s200, %s202
      %p209 = scmp.eq.s32.totalorder %s26, 1
      %p210 = por %p208, %p209
      %p211 = scmp.ne.s32.totalorder %s202, %s203
      %p212 = scmp.eq.s32.totalorder %s26, 0
      %p213 = por %p211, %p212
      %p214 = scmp.ne.s32.totalorder %s202, %s203
      %p215 = scmp.eq.s32.totalorder %s27, 1
      %p216 = por %p214, %p215
      %p218 = scmp.ne.s32.totalorder %s203, %s217
      %p219 = scmp.eq.s32.totalorder %s27, 0
      %p220 = por %p218, %p219
      %s222 = sadd.s32 %s221, 1
      %p225 = scmp.eq.s32.totalorder %s21, 1
      %p226 = scmp.ne.s32.totalorder %s221, %s223
      %p227 = scmp.eq.s32.totalorder %s21, 0
      %p228 = por %p226, %p227
      %p229 = scmp.ne.s32.totalorder %s221, %s223
      %p230 = scmp.eq.s32.totalorder %s26, 1
      %p231 = por %p229, %p230
      %p232 = scmp.ne.s32.totalorder %s223, %s224
      %p233 = scmp.eq.s32.totalorder %s26, 0
      %p234 = por %p232, %p233
      %p235 = scmp.ne.s32.totalorder %s223, %s224
      %p236 = scmp.eq.s32.totalorder %s27, 1
      %p237 = por %p235, %p236
      %p239 = scmp.ne.s32.totalorder %s224, %s238
      %p240 = scmp.eq.s32.totalorder %s27, 0
      %p241 = por %p239, %p240
      %s242 = ssub.s32 %s28, %s40
      %s243 = ssub.s32 %s29, %s36
      %s244 = sor.u32 %s242, %s243
      %p245 = scmp.eq.s32.totalorder %s244, 0
      %s247 = sadd.s32 %s246, 1
      %s248 = scalar_select %p245, %s246, %s247
      %p251 = pneg %p245
      %p252 = scmp.eq.s32.totalorder %s21, 1
      %p253 = por %p251, %p252
      %p254 = scmp.ne.s32.totalorder %s246, %s249
      %p255 = scmp.eq.s32.totalorder %s21, 0
      %p256 = por %p254, %p255
      %p257 = scmp.ne.s32.totalorder %s246, %s249
      %p258 = scmp.eq.s32.totalorder %s26, 1
      %p259 = por %p257, %p258
      %p260 = scmp.ne.s32.totalorder %s249, %s250
      %p261 = scmp.eq.s32.totalorder %s26, 0
      %p262 = por %p260, %p261
      %p263 = scmp.ne.s32.totalorder %s249, %s250
      %p264 = scmp.eq.s32.totalorder %s27, 1
      %p265 = por %p263, %p264
      %p267 = scmp.ne.s32.totalorder %s250, %s266
      %p268 = scmp.eq.s32.totalorder %s27, 0
      %p269 = por %p267, %p268
      %s270 = ssub.s32 %s28, %s40
      %s271 = ssub.s32 %s29, %s36
      %s272 = sor.u32 %s270, %s271
      %p273 = scmp.eq.s32.totalorder %s272, 0
      %s275 = sadd.s32 %s274, 1
      %s276 = scalar_select %p273, %s274, %s275
      %p279 = pneg %p273
      %p280 = scmp.eq.s32.totalorder %s21, 1
      %p281 = por %p279, %p280
      %p282 = scmp.ne.s32.totalorder %s274, %s277
      %p283 = scmp.eq.s32.totalorder %s21, 0
      %p284 = por %p282, %p283
      %p285 = scmp.ne.s32.totalorder %s274, %s277
      %p286 = scmp.eq.s32.totalorder %s26, 1
      %p287 = por %p285, %p286
      %p288 = scmp.ne.s32.totalorder %s277, %s278
      %p289 = scmp.eq.s32.totalorder %s26, 0
      %p290 = por %p288, %p289
      %p291 = scmp.ne.s32.totalorder %s277, %s278
      %p292 = scmp.eq.s32.totalorder %s27, 1
      %p293 = por %p291, %p292
      %p295 = scmp.ne.s32.totalorder %s278, %s294
      %p296 = scmp.eq.s32.totalorder %s27, 0
      %p297 = por %p295, %p296
      %p298 = scmp.le.s32.totalorder 1, %s21
      %p299 = scmp.lt.s32.totalorder %s21, 3
      %p300 = pnand %p298, %p299
      %p301 = pneg %p300
      // Predicated region
      $region9: #{self_attn.1} parent=5 // pred_check
        _
      $region10: #{self_attn.1} parent=5 // pred_check_branch
        %303 = sbr.rel (%p300) target = $region12
      $region11: #{self_attn.1} parent=5 // pred_region
        %s304 = ssub.s32 %s21, 1
        // Predicated region
        $region13: #{self_attn.1} parent=11 // pred_check
          %p305 = pneg %p108
        $region14: #{self_attn.1} parent=11 // pred_check_branch
          %307 = sbr.rel (%p305) target = $region16
        $region15: #{self_attn.1} parent=11 // pred_region
          _
        $region16: #{self_attn.1} parent=11 // pred_fallthru
          _
        // Predicated region
        $region17: #{self_attn.1} parent=11 // pred_check
          %p308 = pneg %p129
        $region18: #{self_attn.1} parent=11 // pred_check_branch
          %310 = sbr.rel (%p308) target = $region20
        $region19: #{self_attn.1} parent=11 // pred_region
          _
        $region20: #{self_attn.1} parent=11 // pred_fallthru
          _
        // Predicated region
        $region21: #{self_attn.1} parent=11 // pred_check
          %p311 = pneg %p150
        $region22: #{self_attn.1} parent=11 // pred_check_branch
          %313 = sbr.rel (%p311) target = $region24
        $region23: #{self_attn.1} parent=11 // pred_region
          _
        $region24: #{self_attn.1} parent=11 // pred_fallthru
          _
        // Predicated region
        $region25: #{self_attn.1} parent=11 // pred_check
          %p314 = pneg %p171
        $region26: #{self_attn.1} parent=11 // pred_check_branch
          %316 = sbr.rel (%p314) target = $region28
        $region27: #{self_attn.1} parent=11 // pred_region
          _
        $region28: #{self_attn.1} parent=11 // pred_fallthru
          _
        // Predicated region
        $region29: #{self_attn.1} parent=11 // pred_check
          %p317 = pneg %p192
        $region30: #{self_attn.1} parent=11 // pred_check_branch
          %319 = sbr.rel (%p317) target = $region32
        $region31: #{self_attn.1} parent=11 // pred_region
          _
        $region32: #{self_attn.1} parent=11 // pred_fallthru
          _
        // Predicated region
        $region33: #{self_attn.1} parent=11 // pred_check
          %p320 = pneg %p213
        $region34: #{self_attn.1} parent=11 // pred_check_branch
          %322 = sbr.rel (%p320) target = $region36
        $region35: #{self_attn.1} parent=11 // pred_region
          _
        $region36: #{self_attn.1} parent=11 // pred_fallthru
          _
        // Predicated region
        $region37: #{self_attn.1} parent=11 // pred_check
          %p323 = pneg %p234
        $region38: #{self_attn.1} parent=11 // pred_check_branch
          %325 = sbr.rel (%p323) target = $region40
        $region39: #{self_attn.1} parent=11 // pred_region
          _
        $region40: #{self_attn.1} parent=11 // pred_fallthru
          _
      $region12: #{self_attn.1} parent=5 // pred_fallthru
        _
      %p326 = scmp.lt.s32.totalorder %s21, 2
      // Predicated region
      $region41: #{self_attn.1} parent=5 // pred_check
        %p327 = pneg %p326
      $region42: #{self_attn.1} parent=5 // pred_check_branch
        %329 = sbr.rel (%p327) target = $region44
      $region43: #{self_attn.1} parent=5 // pred_region
        // Predicated region
        $region45: #{self_attn.1} parent=43 // pred_check
          %p330 = pneg %p53
        $region46: #{self_attn.1} parent=43 // pred_check_branch
          %332 = sbr.rel (%p330) target = $region48
        $region47: #{self_attn.1} parent=43 // pred_region
          %p333 = scmp.lt.s32.totalorder %s28, 1
          %s334 = scalar_select %p333, %s28, 1
          %s335 = smul.addr %s334, 32
          %s336 = smul.addr %s335, 4
          %s337 = scalar_lea.vmem %s0, %s336
        $region48: #{self_attn.1} parent=43 // pred_fallthru
          _
        // Predicated region
        $region49: #{self_attn.1} parent=43 // pred_check
          %p338 = pneg %p81
        $region50: #{self_attn.1} parent=43 // pred_check_branch
          %340 = sbr.rel (%p338) target = $region52
        $region51: #{self_attn.1} parent=43 // pred_region
          %s341 = smul.u32 32, %s29
          %p342 = scmp.lt.s32.totalorder %s28, 1
          %s343 = scalar_select %p342, %s28, 1
          %p344 = scmp.lt.s32.totalorder %s341, 31
          %s345 = scalar_select %p344, %s341, 31
          %s346 = smul.addr %s343, 32
          %s347 = sadd.s32 %s345, %s346
          %s348 = smul.addr %s347, 8
          %s349 = scalar_lea.vmem %s1, %s348
          %s350 = smul.u32 32, %s29
        $region52: #{self_attn.1} parent=43 // pred_fallthru
          _
      $region44: #{self_attn.1} parent=5 // pred_fallthru
        _
      %p351 = scmp.le.s32.totalorder 1, %s21
      %p352 = scmp.lt.s32.totalorder %s21, 3
      %p353 = pnand %p351, %p352
      %p354 = pneg %p353
      // Predicated region
      $region53: #{self_attn.1} parent=5 // pred_check
        _
      $region54: #{self_attn.1} parent=5 // pred_check_branch
        %356 = sbr.rel (%p353) target = $region56
      $region55: #{self_attn.1} parent=5 // pred_region
        %s357 = ssub.s32 %s21, 1
        %p358 = scmp.lt.s32.totalorder %s30, 1
        %s359 = scalar_select %p358, %s30, 1
        %s360 = smul.addr %s359, 32
        %s361 = smul.addr %s360, 4
        %s362 = scalar_lea.vmem %s0, %s361
        %p363 = pneg %p59
        %p364 = pneg %p56
        %s365 = smul.u32 32, %s31
        %p366 = scmp.lt.s32.totalorder %s30, 1
        %s367 = scalar_select %p366, %s30, 1
        %p368 = scmp.lt.s32.totalorder %s365, 31
        %s369 = scalar_select %p368, %s365, 31
        %s370 = smul.addr %s367, 32
        %s371 = sadd.s32 %s369, %s370
        %s372 = smul.addr %s371, 8
        %s373 = scalar_lea.vmem %s1, %s372
        %p374 = pneg %p87
        %p375 = pneg %p84
        %p376 = pneg %p108
        %p377 = pneg %p105
        %p378 = pneg %p129
        %p379 = pneg %p126
        %p380 = pneg %p150
        %p381 = pneg %p147
        %p382 = pneg %p171
        %p383 = pneg %p168
        %p384 = pneg %p192
        %p385 = pneg %p189
        %p386 = pneg %p213
        %p387 = pneg %p210
        %p388 = pneg %p234
        %p389 = pneg %p231
        %p390 = pneg %p262
        %p391 = pneg %p259
        %s392 = smul.u32 32, %s31
        %p393 = scmp.lt.s32.totalorder %s30, 1
        %s394 = scalar_select %p393, %s30, 1
        %p395 = scmp.lt.s32.totalorder %s392, 31
        %s396 = scalar_select %p395, %s392, 31
        %s397 = smul.addr %s394, 32
        %s398 = sadd.s32 %s396, %s397
        %s399 = smul.addr %s398, 8
        %s400 = scalar_lea.vmem %s9, %s399
        %p401 = pneg %p290
        %p402 = pneg %p287
        %s403 = sand.u32 %s277, 1
        %s404 = scalar_lea.sflag [#allocation6], %s403
        %s405 = sand.u32 %s277, 1
        %s406 = smul.addr %s405, 256
        %s407 = scalar_lea.vmem [#allocation5], %s406
        %p408 = scmp.lt.s32.totalorder %s30, 1
        %s409 = scalar_select %p408, %s30, 1
        %s410 = smul.addr %s409, 32
        %s411 = smul.addr %s410, 4
        %s412 = scalar_lea.vmem %s0, %s411
        %s413 = smul.u32 32, %s31
        %p414 = scmp.lt.s32.totalorder %s30, 1
        %s415 = scalar_select %p414, %s30, 1
        %p416 = scmp.lt.s32.totalorder %s413, 31
        %s417 = scalar_select %p416, %s413, 31
        %s418 = smul.addr %s415, 32
        %s419 = sadd.s32 %s417, %s418
        %s420 = smul.addr %s419, 8
        %s421 = scalar_lea.vmem %s1, %s420
        %s422 = smul.u32 32, %s31
        %s423 = smul.u32 32, %s31
        %p424 = scmp.lt.s32.totalorder %s30, 1
        %s425 = scalar_select %p424, %s30, 1
        %p426 = scmp.lt.s32.totalorder %s423, 31
        %s427 = scalar_select %p426, %s423, 31
        %s428 = smul.addr %s425, 32
        %s429 = sadd.s32 %s427, %s428
        %s430 = smul.addr %s429, 8
        %s431 = scalar_lea.vmem %s9, %s430
        %s432 = smul.u32 32, %s31
        %s433 = smul.u32 32, %s31
        %p435 = scmp.eq.s32.totalorder %s31, 0
        // Predicated region
        $region57: #{self_attn.1} parent=55 // pred_check
          %p436 = pneg %p435
        $region58: #{self_attn.1} parent=55 // pred_check_branch
          %438 = sbr.rel (%p436) target = $region60
        $region59: #{self_attn.1} parent=55 // pred_region
          %v439 = vld [vmem:[%s412] sm:$0xf]
          %v440 = vld [vmem:[%s412 + $0x4] sm:$0xf]
          %v441 = vld [vmem:[%s412 + $0x8] sm:$0xf]
          %v442 = vld [vmem:[%s412 + $0xc] sm:$0xf]
          %v443 = vld [vmem:[%s412 + $0x10] sm:$0xf]
          %v444 = vld [vmem:[%s412 + $0x14] sm:$0xf]
          %v445 = vld [vmem:[%s412 + $0x18] sm:$0xf]
          %v446 = vld [vmem:[%s412 + $0x1c] sm:$0xf]
          %v447 = vld [vmem:[%s412 + $0x20] sm:$0xf]
          %v448 = vld [vmem:[%s412 + $0x24] sm:$0xf]
          %v449 = vld [vmem:[%s412 + $0x28] sm:$0xf]
          %v450 = vld [vmem:[%s412 + $0x2c] sm:$0xf]
          %v451 = vld [vmem:[%s412 + $0x30] sm:$0xf]
          %v452 = vld [vmem:[%s412 + $0x34] sm:$0xf]
          %v453 = vld [vmem:[%s412 + $0x38] sm:$0xf]
          %v454 = vld [vmem:[%s412 + $0x3c] sm:$0xf]
          %v455 = vld [vmem:[%s412 + $0x40] sm:$0xf]
          %v456 = vld [vmem:[%s412 + $0x44] sm:$0xf]
          %v457 = vld [vmem:[%s412 + $0x48] sm:$0xf]
          %v458 = vld [vmem:[%s412 + $0x4c] sm:$0xf]
          %v459 = vld [vmem:[%s412 + $0x50] sm:$0xf]
          %v460 = vld [vmem:[%s412 + $0x54] sm:$0xf]
          %v461 = vld [vmem:[%s412 + $0x58] sm:$0xf]
          %v462 = vld [vmem:[%s412 + $0x5c] sm:$0xf]
          %v463 = vld [vmem:[%s412 + $0x60] sm:$0xf]
          %v464 = vld [vmem:[%s412 + $0x64] sm:$0xf]
          %v465 = vld [vmem:[%s412 + $0x68] sm:$0xf]
          %v466 = vld [vmem:[%s412 + $0x6c] sm:$0xf]
          %v467 = vld [vmem:[%s412 + $0x70] sm:$0xf]
          %v468 = vld [vmem:[%s412 + $0x74] sm:$0xf]
          %v469 = vld [vmem:[%s412 + $0x78] sm:$0xf]
          %v470 = vld [vmem:[%s412 + $0x7c] sm:$0xf]
          %v471 = vld [vmem:[%s6] sm:$0x3]
          %v472 = vld [vmem:[%s7] sm:$0x1]
          %v474 = vperm.slane %v472, 0
          %v508 = vunpack.c.l.b16 %v439
          %v509 = vunpack.c.l.b16 %v440
          %v510 = vunpack.c.l.b16 %v441
          %v511 = vunpack.c.l.b16 %v442
          %v512 = vunpack.c.l.b16 %v443
          %v513 = vunpack.c.l.b16 %v444
          %v514 = vunpack.c.l.b16 %v445
          %v515 = vunpack.c.l.b16 %v446
          %v516 = vunpack.c.l.b16 %v447
          %v517 = vunpack.c.l.b16 %v448
          %v518 = vunpack.c.l.b16 %v449
          %v519 = vunpack.c.l.b16 %v450
          %v520 = vunpack.c.l.b16 %v451
          %v521 = vunpack.c.l.b16 %v452
          %v522 = vunpack.c.l.b16 %v453
          %v523 = vunpack.c.l.b16 %v454
          %v524 = vunpack.c.l.b16 %v455
          %v525 = vunpack.c.l.b16 %v456
          %v526 = vunpack.c.l.b16 %v457
          %v527 = vunpack.c.l.b16 %v458
          %v528 = vunpack.c.l.b16 %v459
          %v529 = vunpack.c.l.b16 %v460
          %v530 = vunpack.c.l.b16 %v461
          %v531 = vunpack.c.l.b16 %v462
          %v532 = vunpack.c.l.b16 %v463
          %v533 = vunpack.c.l.b16 %v464
          %v534 = vunpack.c.l.b16 %v465
          %v535 = vunpack.c.l.b16 %v466
          %v536 = vunpack.c.l.b16 %v467
          %v537 = vunpack.c.l.b16 %v468
          %v538 = vunpack.c.l.b16 %v469
          %v539 = vunpack.c.l.b16 %v470
          %v540 = vpack.c.b16 %v509, %v508
          %v541 = vpack.c.b16 %v511, %v510
          %v542 = vpack.c.b16 %v513, %v512
          %v543 = vpack.c.b16 %v515, %v514
          %v544 = vpack.c.b16 %v517, %v516
          %v545 = vpack.c.b16 %v519, %v518
          %v546 = vpack.c.b16 %v521, %v520
          %v547 = vpack.c.b16 %v523, %v522
          %v548 = vpack.c.b16 %v525, %v524
          %v549 = vpack.c.b16 %v527, %v526
          %v550 = vpack.c.b16 %v529, %v528
          %v551 = vpack.c.b16 %v531, %v530
          %v552 = vpack.c.b16 %v533, %v532
          %v553 = vpack.c.b16 %v535, %v534
          %v554 = vpack.c.b16 %v537, %v536
          %v555 = vpack.c.b16 %v539, %v538
          %vm556 = vcmask 31744
          %v558 = vsel %vm556, %v540, 0
          %v561 = vsel %vm556, %v541, 0
          %v564 = vsel %vm556, %v542, 0
          %v567 = vsel %vm556, %v543, 0
          %v570 = vsel %vm556, %v544, 0
          %v573 = vsel %vm556, %v545, 0
          %v576 = vsel %vm556, %v546, 0
          %v579 = vsel %vm556, %v547, 0
          %v582 = vsel %vm556, %v548, 0
          %v585 = vsel %vm556, %v549, 0
          %v588 = vsel %vm556, %v550, 0
          %v591 = vsel %vm556, %v551, 0
          %v594 = vsel %vm556, %v552, 0
          %v597 = vsel %vm556, %v553, 0
          %v600 = vsel %vm556, %v554, 0
          %v603 = vsel %vm556, %v555, 0
          %vm605 = vcmask 1041408
          %v607 = vsel %vm605, %v471, 0
          %609 = vmatpush.bf16.msra.mxu0 0
          %610 = vmatpush.bf16.msra.mxu0 0
          %611 = vmatpush.bf16.msra.mxu0 0
          %612 = vmatpush.bf16.msra.mxu0 0
          %613 = vmatpush.bf16.msra.mxu0 0
          %614 = vmatpush.bf16.msra.mxu0 0
          %615 = vmatpush.bf16.msra.mxu0 0
          %616 = vmatpush.bf16.msra.mxu0 %v607
          %617 = vmatmul.bf16.gmra.mxu0 %v558
          %v618 = vpop.f32.mrf.mxu0
          %v619 = vadd.f32 %v474, %v618
          %v620 = vpop.f32.mrf.mxu0
          %v621 = vadd.f32 %v474, %v620
          %622 = vmatmul.bf16.gmra.mxu0 %v561
          %v623 = vpop.f32.mrf.mxu0
          %v624 = vadd.f32 %v474, %v623
          %v625 = vpop.f32.mrf.mxu0
          %v626 = vadd.f32 %v474, %v625
          %627 = vmatmul.bf16.gmra.mxu0 %v564
          %v628 = vpop.f32.mrf.mxu0
          %v629 = vadd.f32 %v474, %v628
          %v630 = vpop.f32.mrf.mxu0
          %v631 = vadd.f32 %v474, %v630
          %632 = vmatmul.bf16.gmra.mxu0 %v567
          %v633 = vpop.f32.mrf.mxu0
          %v634 = vadd.f32 %v474, %v633
          %v635 = vpop.f32.mrf.mxu0
          %v636 = vadd.f32 %v474, %v635
          %637 = vmatmul.bf16.gmra.mxu0 %v570
          %v638 = vpop.f32.mrf.mxu0
          %v639 = vadd.f32 %v474, %v638
          %v640 = vpop.f32.mrf.mxu0
          %v641 = vadd.f32 %v474, %v640
          %642 = vmatmul.bf16.gmra.mxu0 %v573
          %v643 = vpop.f32.mrf.mxu0
          %v644 = vadd.f32 %v474, %v643
          %v645 = vpop.f32.mrf.mxu0
          %v646 = vadd.f32 %v474, %v645
          %647 = vmatmul.bf16.gmra.mxu0 %v576
          %v648 = vpop.f32.mrf.mxu0
          %v649 = vadd.f32 %v474, %v648
          %v650 = vpop.f32.mrf.mxu0
          %v651 = vadd.f32 %v474, %v650
          %652 = vmatmul.bf16.gmra.mxu0 %v579
          %v653 = vpop.f32.mrf.mxu0
          %v654 = vadd.f32 %v474, %v653
          %v655 = vpop.f32.mrf.mxu0
          %v656 = vadd.f32 %v474, %v655
          %657 = vmatmul.bf16.gmra.mxu0 %v582
          %v658 = vpop.f32.mrf.mxu0
          %v659 = vadd.f32 %v474, %v658
          %v660 = vpop.f32.mrf.mxu0
          %v661 = vadd.f32 %v474, %v660
          %662 = vmatmul.bf16.gmra.mxu0 %v585
          %v663 = vpop.f32.mrf.mxu0
          %v664 = vadd.f32 %v474, %v663
          %v665 = vpop.f32.mrf.mxu0
          %v666 = vadd.f32 %v474, %v665
          %667 = vmatmul.bf16.gmra.mxu0 %v588
          %v668 = vpop.f32.mrf.mxu0
          %v669 = vadd.f32 %v474, %v668
          %v670 = vpop.f32.mrf.mxu0
          %v671 = vadd.f32 %v474, %v670
          %672 = vmatmul.bf16.gmra.mxu0 %v591
          %v673 = vpop.f32.mrf.mxu0
          %v674 = vadd.f32 %v474, %v673
          %v675 = vpop.f32.mrf.mxu0
          %v676 = vadd.f32 %v474, %v675
          %677 = vmatmul.bf16.gmra.mxu0 %v594
          %v678 = vpop.f32.mrf.mxu0
          %v679 = vadd.f32 %v474, %v678
          %v680 = vpop.f32.mrf.mxu0
          %v681 = vadd.f32 %v474, %v680
          %682 = vmatmul.bf16.gmra.mxu0 %v597
          %v683 = vpop.f32.mrf.mxu0
          %v684 = vadd.f32 %v474, %v683
          %v685 = vpop.f32.mrf.mxu0
          %v686 = vadd.f32 %v474, %v685
          %687 = vmatmul.bf16.gmra.mxu0 %v600
          %v688 = vpop.f32.mrf.mxu0
          %v689 = vadd.f32 %v474, %v688
          %v690 = vpop.f32.mrf.mxu0
          %v691 = vadd.f32 %v474, %v690
          %692 = vmatmul.bf16.gmra.mxu0 %v603
          %v693 = vpop.f32.mrf.mxu0
          %v694 = vadd.f32 %v474, %v693
          %v695 = vpop.f32.mrf.mxu0
          %v696 = vadd.f32 %v474, %v695
          %697 = vdwg.mxu0
          %v698 = vpack.c.bf16 %v619, %v619
          %v699 = vpack.c.bf16 %v621, %v621
          %v700 = vpack.c.bf16 %v624, %v624
          %v701 = vpack.c.bf16 %v626, %v626
          %v702 = vpack.c.bf16 %v629, %v629
          %v703 = vpack.c.bf16 %v631, %v631
          %v704 = vpack.c.bf16 %v634, %v634
          %v705 = vpack.c.bf16 %v636, %v636
          %v706 = vpack.c.bf16 %v639, %v639
          %v707 = vpack.c.bf16 %v641, %v641
          %v708 = vpack.c.bf16 %v644, %v644
          %v709 = vpack.c.bf16 %v646, %v646
          %v710 = vpack.c.bf16 %v649, %v649
          %v711 = vpack.c.bf16 %v651, %v651
          %v712 = vpack.c.bf16 %v654, %v654
          %v713 = vpack.c.bf16 %v656, %v656
          %v714 = vpack.c.bf16 %v659, %v659
          %v715 = vpack.c.bf16 %v661, %v661
          %v716 = vpack.c.bf16 %v664, %v664
          %v717 = vpack.c.bf16 %v666, %v666
          %v718 = vpack.c.bf16 %v669, %v669
          %v719 = vpack.c.bf16 %v671, %v671
          %v720 = vpack.c.bf16 %v674, %v674
          %v721 = vpack.c.bf16 %v676, %v676
          %v722 = vpack.c.bf16 %v679, %v679
          %v723 = vpack.c.bf16 %v681, %v681
          %v724 = vpack.c.bf16 %v684, %v684
          %v725 = vpack.c.bf16 %v686, %v686
          %v726 = vpack.c.bf16 %v689, %v689
          %v727 = vpack.c.bf16 %v691, %v691
          %v728 = vpack.c.bf16 %v694, %v694
          %v729 = vpack.c.bf16 %v696, %v696
          %vm730 = vcmask 27648
          %731 = vst.msk [vmem:[#allocation3] sm:$0xf] %vm730, %v698
          %732 = vst.msk [vmem:[#allocation3 + $0x4] sm:$0xf] %vm730, %v699
          %733 = vst.msk [vmem:[#allocation3 + $0x8] sm:$0xf] %vm730, %v700
          %734 = vst.msk [vmem:[#allocation3 + $0xc] sm:$0xf] %vm730, %v701
          %735 = vst.msk [vmem:[#allocation3 + $0x10] sm:$0xf] %vm730, %v702
          %736 = vst.msk [vmem:[#allocation3 + $0x14] sm:$0xf] %vm730, %v703
          %737 = vst.msk [vmem:[#allocation3 + $0x18] sm:$0xf] %vm730, %v704
          %738 = vst.msk [vmem:[#allocation3 + $0x1c] sm:$0xf] %vm730, %v705
          %739 = vst.msk [vmem:[#allocation3 + $0x20] sm:$0xf] %vm730, %v706
          %740 = vst.msk [vmem:[#allocation3 + $0x24] sm:$0xf] %vm730, %v707
          %741 = vst.msk [vmem:[#allocation3 + $0x28] sm:$0xf] %vm730, %v708
          %742 = vst.msk [vmem:[#allocation3 + $0x2c] sm:$0xf] %vm730, %v709
          %743 = vst.msk [vmem:[#allocation3 + $0x30] sm:$0xf] %vm730, %v710
          %744 = vst.msk [vmem:[#allocation3 + $0x34] sm:$0xf] %vm730, %v711
          %745 = vst.msk [vmem:[#allocation3 + $0x38] sm:$0xf] %vm730, %v712
          %746 = vst.msk [vmem:[#allocation3 + $0x3c] sm:$0xf] %vm730, %v713
          %747 = vst.msk [vmem:[#allocation3 + $0x40] sm:$0xf] %vm730, %v714
          %748 = vst.msk [vmem:[#allocation3 + $0x44] sm:$0xf] %vm730, %v715
          %749 = vst.msk [vmem:[#allocation3 + $0x48] sm:$0xf] %vm730, %v716
          %750 = vst.msk [vmem:[#allocation3 + $0x4c] sm:$0xf] %vm730, %v717
          %751 = vst.msk [vmem:[#allocation3 + $0x50] sm:$0xf] %vm730, %v718
          %752 = vst.msk [vmem:[#allocation3 + $0x54] sm:$0xf] %vm730, %v719
          %753 = vst.msk [vmem:[#allocation3 + $0x58] sm:$0xf] %vm730, %v720
          %754 = vst.msk [vmem:[#allocation3 + $0x5c] sm:$0xf] %vm730, %v721
          %755 = vst.msk [vmem:[#allocation3 + $0x60] sm:$0xf] %vm730, %v722
          %756 = vst.msk [vmem:[#allocation3 + $0x64] sm:$0xf] %vm730, %v723
          %757 = vst.msk [vmem:[#allocation3 + $0x68] sm:$0xf] %vm730, %v724
          %758 = vst.msk [vmem:[#allocation3 + $0x6c] sm:$0xf] %vm730, %v725
          %759 = vst.msk [vmem:[#allocation3 + $0x70] sm:$0xf] %vm730, %v726
          %760 = vst.msk [vmem:[#allocation3 + $0x74] sm:$0xf] %vm730, %v727
          %761 = vst.msk [vmem:[#allocation3 + $0x78] sm:$0xf] %vm730, %v728
          %762 = vst.msk [vmem:[#allocation3 + $0x7c] sm:$0xf] %vm730, %v729
          %v763 = vld [vmem:[%s4] sm:$0x1]
          %v764 = vld [vmem:[%s5] sm:$0x3]
          %766 = vset.pattern.permute.xlu0 0
          %767 = vperm.xlu0 %766, %v764
          %v768 = vpop.permute.xlu0 %767
          %v771 = vsel %vm556, %v763, 0
          %773 = vmatpush.bf16.xpose.msra.mxu0 %v579
          %774 = vmatpush.bf16.xpose.msra.mxu0 %v576
          %775 = vmatpush.bf16.xpose.msra.mxu0 %v573
          %776 = vmatpush.bf16.xpose.msra.mxu0 %v570
          %777 = vmatpush.bf16.xpose.msra.mxu0 %v567
          %778 = vmatpush.bf16.xpose.msra.mxu0 %v564
          %779 = vmatpush.bf16.xpose.msra.mxu0 %v561
          %780 = vmatpush.bf16.xpose.msra.mxu0 %v558
          %781 = vmatmul.bf16.gmra.mxu0 %v771
          %v782 = vpop.f32.mrf.mxu0
          %v783 = vadd.f32 %v768, %v782
          %v784 = vpop.f32.mrf.mxu0
          %785 = vdwg.mxu0
          %786 = vmatpush.bf16.xpose.msra.mxu0 %v603
          %787 = vmatpush.bf16.xpose.msra.mxu0 %v600
          %788 = vmatpush.bf16.xpose.msra.mxu0 %v597
          %789 = vmatpush.bf16.xpose.msra.mxu0 %v594
          %790 = vmatpush.bf16.xpose.msra.mxu0 %v591
          %791 = vmatpush.bf16.xpose.msra.mxu0 %v588
          %792 = vmatpush.bf16.xpose.msra.mxu0 %v585
          %793 = vmatpush.bf16.xpose.msra.mxu0 %v582
          %794 = vmatmul.bf16.gmra.mxu0 %v771
          %v795 = vpop.f32.mrf.mxu0
          %v796 = vadd.f32 %v768, %v795
          %v797 = vpop.f32.mrf.mxu0
          %798 = vdwg.mxu0
          %v799 = vpack.c.bf16 %v796, %v783
          %v801 = vrot.slane %v799, 3
          %vm802 = vcmask 1040384
          %v805 = vsel %vm802, %v799, %v801
          %807 = vst [vmem:[#allocation2] sm:$0x3] %v805
        $region60: #{self_attn.1} parent=55 // pred_fallthru
          _
        %s808 = smul.u32 %s31, 256
        %s809 = sshra.s32 %s808, 3
        %s810 = sand.u32 %s808, 7
        %s811 = smul.addr %s809, 4
        %s812 = scalar_lea.vmem %s412, %s811
        %v813 = vld [vmem:[%s812] sm:$0xf]
        %v814 = vld [vmem:[%s812 + $0x4] sm:$0xf]
        %v815 = vld [vmem:[%s812 + $0x8] sm:$0xf]
        %v816 = vld [vmem:[%s812 + $0xc] sm:$0xf]
        %v817 = vld [vmem:[%s812 + $0x10] sm:$0xf]
        %v818 = vld [vmem:[%s812 + $0x14] sm:$0xf]
        %v819 = vld [vmem:[%s812 + $0x18] sm:$0xf]
        %v820 = vld [vmem:[%s812 + $0x1c] sm:$0xf]
        %v821 = vld [vmem:[%s812 + $0x20] sm:$0xf]
        %v822 = vld [vmem:[%s812 + $0x24] sm:$0xf]
        %v823 = vld [vmem:[%s812 + $0x28] sm:$0xf]
        %v824 = vld [vmem:[%s812 + $0x2c] sm:$0xf]
        %v825 = vld [vmem:[%s812 + $0x30] sm:$0xf]
        %v826 = vld [vmem:[%s812 + $0x34] sm:$0xf]
        %v827 = vld [vmem:[%s812 + $0x38] sm:$0xf]
        %v828 = vld [vmem:[%s812 + $0x3c] sm:$0xf]
        %v829 = vld [vmem:[%s812 + $0x40] sm:$0xf]
        %v830 = vld [vmem:[%s812 + $0x44] sm:$0xf]
        %v831 = vld [vmem:[%s812 + $0x48] sm:$0xf]
        %v832 = vld [vmem:[%s812 + $0x4c] sm:$0xf]
        %v833 = vld [vmem:[%s812 + $0x50] sm:$0xf]
        %v834 = vld [vmem:[%s812 + $0x54] sm:$0xf]
        %v835 = vld [vmem:[%s812 + $0x58] sm:$0xf]
        %v836 = vld [vmem:[%s812 + $0x5c] sm:$0xf]
        %v837 = vld [vmem:[%s812 + $0x60] sm:$0xf]
        %v838 = vld [vmem:[%s812 + $0x64] sm:$0xf]
        %v839 = vld [vmem:[%s812 + $0x68] sm:$0xf]
        %v840 = vld [vmem:[%s812 + $0x6c] sm:$0xf]
        %v841 = vld [vmem:[%s812 + $0x70] sm:$0xf]
        %v842 = vld [vmem:[%s812 + $0x74] sm:$0xf]
        %v843 = vld [vmem:[%s812 + $0x78] sm:$0xf]
        %v844 = vld [vmem:[%s812 + $0x7c] sm:$0xf]
        %v845 = vld [vmem:[%s2] sm:$0x3]
        %v846 = vld [vmem:[%s3] sm:$0x1]
        %v848 = vperm.slane %v846, 0
        %v882 = vunpack.c.l.b16 %v813
        %v883 = vunpack.c.l.b16 %v814
        %v884 = vunpack.c.l.b16 %v815
        %v885 = vunpack.c.l.b16 %v816
        %v886 = vunpack.c.l.b16 %v817
        %v887 = vunpack.c.l.b16 %v818
        %v888 = vunpack.c.l.b16 %v819
        %v889 = vunpack.c.l.b16 %v820
        %v890 = vunpack.c.l.b16 %v821
        %v891 = vunpack.c.l.b16 %v822
        %v892 = vunpack.c.l.b16 %v823
        %v893 = vunpack.c.l.b16 %v824
        %v894 = vunpack.c.l.b16 %v825
        %v895 = vunpack.c.l.b16 %v826
        %v896 = vunpack.c.l.b16 %v827
        %v897 = vunpack.c.l.b16 %v828
        %v898 = vunpack.c.l.b16 %v829
        %v899 = vunpack.c.l.b16 %v830
        %v900 = vunpack.c.l.b16 %v831
        %v901 = vunpack.c.l.b16 %v832
        %v902 = vunpack.c.l.b16 %v833
        %v903 = vunpack.c.l.b16 %v834
        %v904 = vunpack.c.l.b16 %v835
        %v905 = vunpack.c.l.b16 %v836
        %v906 = vunpack.c.l.b16 %v837
        %v907 = vunpack.c.l.b16 %v838
        %v908 = vunpack.c.l.b16 %v839
        %v909 = vunpack.c.l.b16 %v840
        %v910 = vunpack.c.l.b16 %v841
        %v911 = vunpack.c.l.b16 %v842
        %v912 = vunpack.c.l.b16 %v843
        %v913 = vunpack.c.l.b16 %v844
        %v914 = vpack.c.b16 %v883, %v882
        %v915 = vpack.c.b16 %v885, %v884
        %v916 = vpack.c.b16 %v887, %v886
        %v917 = vpack.c.b16 %v889, %v888
        %v918 = vpack.c.b16 %v891, %v890
        %v919 = vpack.c.b16 %v893, %v892
        %v920 = vpack.c.b16 %v895, %v894
        %v921 = vpack.c.b16 %v897, %v896
        %v922 = vpack.c.b16 %v899, %v898
        %v923 = vpack.c.b16 %v901, %v900
        %v924 = vpack.c.b16 %v903, %v902
        %v925 = vpack.c.b16 %v905, %v904
        %v926 = vpack.c.b16 %v907, %v906
        %v927 = vpack.c.b16 %v909, %v908
        %v928 = vpack.c.b16 %v911, %v910
        %v929 = vpack.c.b16 %v913, %v912
        %vm930 = vcmask 31744
        %v932 = vsel %vm930, %v914, 0
        %v935 = vsel %vm930, %v915, 0
        %v938 = vsel %vm930, %v916, 0
        %v941 = vsel %vm930, %v917, 0
        %v944 = vsel %vm930, %v918, 0
        %v947 = vsel %vm930, %v919, 0
        %v950 = vsel %vm930, %v920, 0
        %v953 = vsel %vm930, %v921, 0
        %v956 = vsel %vm930, %v922, 0
        %v959 = vsel %vm930, %v923, 0
        %v962 = vsel %vm930, %v924, 0
        %v965 = vsel %vm930, %v925, 0
        %v968 = vsel %vm930, %v926, 0
        %v971 = vsel %vm930, %v927, 0
        %v974 = vsel %vm930, %v928, 0
        %v977 = vsel %vm930, %v929, 0
        %vm979 = vcmask 1041408
        %v981 = vsel %vm979, %v845, 0
        %983 = vmatpush.bf16.msra.mxu0 0
        %984 = vmatpush.bf16.msra.mxu0 0
        %985 = vmatpush.bf16.msra.mxu0 0
        %986 = vmatpush.bf16.msra.mxu0 0
        %987 = vmatpush.bf16.msra.mxu0 0
        %988 = vmatpush.bf16.msra.mxu0 0
        %989 = vmatpush.bf16.msra.mxu0 0
        %990 = vmatpush.bf16.msra.mxu0 %v981
        %991 = vmatmul.bf16.gmra.mxu0 %v932
        %v992 = vpop.f32.mrf.mxu0
        %v993 = vadd.f32 %v848, %v992
        %v994 = vpop.f32.mrf.mxu0
        %v995 = vadd.f32 %v848, %v994
        %996 = vmatmul.bf16.gmra.mxu0 %v935
        %v997 = vpop.f32.mrf.mxu0
        %v998 = vadd.f32 %v848, %v997
        %v999 = vpop.f32.mrf.mxu0
        %v1000 = vadd.f32 %v848, %v999
        %1001 = vmatmul.bf16.gmra.mxu0 %v938
        %v1002 = vpop.f32.mrf.mxu0
        %v1003 = vadd.f32 %v848, %v1002
        %v1004 = vpop.f32.mrf.mxu0
        %v1005 = vadd.f32 %v848, %v1004
        %1006 = vmatmul.bf16.gmra.mxu0 %v941
        %v1007 = vpop.f32.mrf.mxu0
        %v1008 = vadd.f32 %v848, %v1007
        %v1009 = vpop.f32.mrf.mxu0
        %v1010 = vadd.f32 %v848, %v1009
        %1011 = vmatmul.bf16.gmra.mxu0 %v944
        %v1012 = vpop.f32.mrf.mxu0
        %v1013 = vadd.f32 %v848, %v1012
        %v1014 = vpop.f32.mrf.mxu0
        %v1015 = vadd.f32 %v848, %v1014
        %1016 = vmatmul.bf16.gmra.mxu0 %v947
        %v1017 = vpop.f32.mrf.mxu0
        %v1018 = vadd.f32 %v848, %v1017
        %v1019 = vpop.f32.mrf.mxu0
        %v1020 = vadd.f32 %v848, %v1019
        %1021 = vmatmul.bf16.gmra.mxu0 %v950
        %v1022 = vpop.f32.mrf.mxu0
        %v1023 = vadd.f32 %v848, %v1022
        %v1024 = vpop.f32.mrf.mxu0
        %v1025 = vadd.f32 %v848, %v1024
        %1026 = vmatmul.bf16.gmra.mxu0 %v953
        %v1027 = vpop.f32.mrf.mxu0
        %v1028 = vadd.f32 %v848, %v1027
        %v1029 = vpop.f32.mrf.mxu0
        %v1030 = vadd.f32 %v848, %v1029
        %1031 = vmatmul.bf16.gmra.mxu0 %v956
        %v1032 = vpop.f32.mrf.mxu0
        %v1033 = vadd.f32 %v848, %v1032
        %v1034 = vpop.f32.mrf.mxu0
        %v1035 = vadd.f32 %v848, %v1034
        %1036 = vmatmul.bf16.gmra.mxu0 %v959
        %v1037 = vpop.f32.mrf.mxu0
        %v1038 = vadd.f32 %v848, %v1037
        %v1039 = vpop.f32.mrf.mxu0
        %v1040 = vadd.f32 %v848, %v1039
        %1041 = vmatmul.bf16.gmra.mxu0 %v962
        %v1042 = vpop.f32.mrf.mxu0
        %v1043 = vadd.f32 %v848, %v1042
        %v1044 = vpop.f32.mrf.mxu0
        %v1045 = vadd.f32 %v848, %v1044
        %1046 = vmatmul.bf16.gmra.mxu0 %v965
        %v1047 = vpop.f32.mrf.mxu0
        %v1048 = vadd.f32 %v848, %v1047
        %v1049 = vpop.f32.mrf.mxu0
        %v1050 = vadd.f32 %v848, %v1049
        %1051 = vmatmul.bf16.gmra.mxu0 %v968
        %v1052 = vpop.f32.mrf.mxu0
        %v1053 = vadd.f32 %v848, %v1052
        %v1054 = vpop.f32.mrf.mxu0
        %v1055 = vadd.f32 %v848, %v1054
        %1056 = vmatmul.bf16.gmra.mxu0 %v971
        %v1057 = vpop.f32.mrf.mxu0
        %v1058 = vadd.f32 %v848, %v1057
        %v1059 = vpop.f32.mrf.mxu0
        %v1060 = vadd.f32 %v848, %v1059
        %1061 = vmatmul.bf16.gmra.mxu0 %v974
        %v1062 = vpop.f32.mrf.mxu0
        %v1063 = vadd.f32 %v848, %v1062
        %v1064 = vpop.f32.mrf.mxu0
        %v1065 = vadd.f32 %v848, %v1064
        %1066 = vmatmul.bf16.gmra.mxu0 %v977
        %v1067 = vpop.f32.mrf.mxu0
        %v1068 = vadd.f32 %v848, %v1067
        %v1069 = vpop.f32.mrf.mxu0
        %v1070 = vadd.f32 %v848, %v1069
        %1071 = vdwg.mxu0
        %v1072 = vpack.c.bf16 %v995, %v993
        %v1073 = vpack.c.bf16 %v1000, %v998
        %v1074 = vpack.c.bf16 %v1005, %v1003
        %v1075 = vpack.c.bf16 %v1010, %v1008
        %v1076 = vpack.c.bf16 %v1015, %v1013
        %v1077 = vpack.c.bf16 %v1020, %v1018
        %v1078 = vpack.c.bf16 %v1025, %v1023
        %v1079 = vpack.c.bf16 %v1030, %v1028
        %v1080 = vpack.c.bf16 %v1035, %v1033
        %v1081 = vpack.c.bf16 %v1040, %v1038
        %v1082 = vpack.c.bf16 %v1045, %v1043
        %v1083 = vpack.c.bf16 %v1050, %v1048
        %v1084 = vpack.c.bf16 %v1055, %v1053
        %v1085 = vpack.c.bf16 %v1060, %v1058
        %v1086 = vpack.c.bf16 %v1065, %v1063
        %v1087 = vpack.c.bf16 %v1070, %v1068
        %v1088 = vld [vmem:[#allocation2] sm:$0x3]
        %1090 = vst [vmem:[#allocation1] ss:$9 sm:$0xff] %v1088
        %v1091 = vld [vmem:[#allocation1] sm:$0xff]
        %v1092 = vld [vmem:[#allocation1 + $0x9] sm:$0xff]
        %vm1093 = vcmask 15360
        %v1095 = vsel %vm1093, %v1072, 0
        %v1098 = vsel %vm1093, %v1073, 0
        %v1101 = vsel %vm1093, %v1074, 0
        %v1104 = vsel %vm1093, %v1075, 0
        %v1107 = vsel %vm1093, %v1076, 0
        %v1110 = vsel %vm1093, %v1077, 0
        %v1113 = vsel %vm1093, %v1078, 0
        %v1116 = vsel %vm1093, %v1079, 0
        %v1119 = vsel %vm1093, %v1080, 0
        %v1122 = vsel %vm1093, %v1081, 0
        %v1125 = vsel %vm1093, %v1082, 0
        %v1128 = vsel %vm1093, %v1083, 0
        %v1131 = vsel %vm1093, %v1084, 0
        %v1134 = vsel %vm1093, %v1085, 0
        %v1137 = vsel %vm1093, %v1086, 0
        %v1140 = vsel %vm1093, %v1087, 0
        %vm1142 = vcmask 1040384
        %v1143 = vsel %vm1142, %v1091, 0
        %v1145 = vsel %vm1142, %v1092, 0
        %1147 = vmatpush.bf16.msra.mxu0 0
        %1148 = vmatpush.bf16.msra.mxu0 0
        %1149 = vmatpush.bf16.msra.mxu0 0
        %1150 = vmatpush.bf16.msra.mxu0 0
        %1151 = vmatpush.bf16.msra.mxu0 0
        %1152 = vmatpush.bf16.msra.mxu0 0
        %1153 = vmatpush.bf16.msra.mxu0 0
        %1154 = vmatpush.bf16.msra.mxu0 %v1143
        %1155 = vmatmul.bf16.gmra.mxu0 %v1095
        %v1156 = vpop.f32.mrf.mxu0
        %v1157 = vadd.f32 0.0, %v1156
        %v1158 = vpop.f32.mrf.mxu0
        %v1159 = vadd.f32 0.0, %v1158
        %1160 = vmatmul.bf16.gmra.mxu0 %v1098
        %v1161 = vpop.f32.mrf.mxu0
        %v1162 = vadd.f32 0.0, %v1161
        %v1163 = vpop.f32.mrf.mxu0
        %v1164 = vadd.f32 0.0, %v1163
        %1165 = vmatmul.bf16.gmra.mxu0 %v1101
        %v1166 = vpop.f32.mrf.mxu0
        %v1167 = vadd.f32 0.0, %v1166
        %v1168 = vpop.f32.mrf.mxu0
        %v1169 = vadd.f32 0.0, %v1168
        %1170 = vmatmul.bf16.gmra.mxu0 %v1104
        %v1171 = vpop.f32.mrf.mxu0
        %v1172 = vadd.f32 0.0, %v1171
        %v1173 = vpop.f32.mrf.mxu0
        %v1174 = vadd.f32 0.0, %v1173
        %1175 = vmatmul.bf16.gmra.mxu0 %v1107
        %v1176 = vpop.f32.mrf.mxu0
        %v1177 = vadd.f32 0.0, %v1176
        %v1178 = vpop.f32.mrf.mxu0
        %v1179 = vadd.f32 0.0, %v1178
        %1180 = vmatmul.bf16.gmra.mxu0 %v1110
        %v1181 = vpop.f32.mrf.mxu0
        %v1182 = vadd.f32 0.0, %v1181
        %v1183 = vpop.f32.mrf.mxu0
        %v1184 = vadd.f32 0.0, %v1183
        %1185 = vmatmul.bf16.gmra.mxu0 %v1113
        %v1186 = vpop.f32.mrf.mxu0
        %v1187 = vadd.f32 0.0, %v1186
        %v1188 = vpop.f32.mrf.mxu0
        %v1189 = vadd.f32 0.0, %v1188
        %1190 = vmatmul.bf16.gmra.mxu0 %v1116
        %v1191 = vpop.f32.mrf.mxu0
        %v1192 = vadd.f32 0.0, %v1191
        %v1193 = vpop.f32.mrf.mxu0
        %v1194 = vadd.f32 0.0, %v1193
        %1195 = vmatmul.bf16.gmra.mxu0 %v1119
        %v1196 = vpop.f32.mrf.mxu0
        %v1197 = vadd.f32 0.0, %v1196
        %v1198 = vpop.f32.mrf.mxu0
        %v1199 = vadd.f32 0.0, %v1198
        %1200 = vmatmul.bf16.gmra.mxu0 %v1122
        %v1201 = vpop.f32.mrf.mxu0
        %v1202 = vadd.f32 0.0, %v1201
        %v1203 = vpop.f32.mrf.mxu0
        %v1204 = vadd.f32 0.0, %v1203
        %1205 = vmatmul.bf16.gmra.mxu0 %v1125
        %v1206 = vpop.f32.mrf.mxu0
        %v1207 = vadd.f32 0.0, %v1206
        %v1208 = vpop.f32.mrf.mxu0
        %v1209 = vadd.f32 0.0, %v1208
        %1210 = vmatmul.bf16.gmra.mxu0 %v1128
        %v1211 = vpop.f32.mrf.mxu0
        %v1212 = vadd.f32 0.0, %v1211
        %v1213 = vpop.f32.mrf.mxu0
        %v1214 = vadd.f32 0.0, %v1213
        %1215 = vmatmul.bf16.gmra.mxu0 %v1131
        %v1216 = vpop.f32.mrf.mxu0
        %v1217 = vadd.f32 0.0, %v1216
        %v1218 = vpop.f32.mrf.mxu0
        %v1219 = vadd.f32 0.0, %v1218
        %1220 = vmatmul.bf16.gmra.mxu0 %v1134
        %v1221 = vpop.f32.mrf.mxu0
        %v1222 = vadd.f32 0.0, %v1221
        %v1223 = vpop.f32.mrf.mxu0
        %v1224 = vadd.f32 0.0, %v1223
        %1225 = vmatmul.bf16.gmra.mxu0 %v1137
        %v1226 = vpop.f32.mrf.mxu0
        %v1227 = vadd.f32 0.0, %v1226
        %v1228 = vpop.f32.mrf.mxu0
        %v1229 = vadd.f32 0.0, %v1228
        %1230 = vmatmul.bf16.gmra.mxu0 %v1140
        %v1231 = vpop.f32.mrf.mxu0
        %v1232 = vadd.f32 0.0, %v1231
        %v1233 = vpop.f32.mrf.mxu0
        %v1234 = vadd.f32 0.0, %v1233
        %1235 = vdwg.mxu0
        %1236 = vmatpush.bf16.msra.mxu0 0
        %1237 = vmatpush.bf16.msra.mxu0 0
        %1238 = vmatpush.bf16.msra.mxu0 0
        %1239 = vmatpush.bf16.msra.mxu0 0
        %1240 = vmatpush.bf16.msra.mxu0 0
        %1241 = vmatpush.bf16.msra.mxu0 0
        %1242 = vmatpush.bf16.msra.mxu0 0
        %1243 = vmatpush.bf16.msra.mxu0 %v1145
        %1244 = vmatmul.bf16.gmra.mxu0 %v1095
        %v1245 = vpop.f32.mrf.mxu0
        %v1246 = vadd.f32 0.0, %v1245
        %v1247 = vpop.f32.mrf.mxu0
        %v1248 = vadd.f32 0.0, %v1247
        %1249 = vmatmul.bf16.gmra.mxu0 %v1098
        %v1250 = vpop.f32.mrf.mxu0
        %v1251 = vadd.f32 0.0, %v1250
        %v1252 = vpop.f32.mrf.mxu0
        %v1253 = vadd.f32 0.0, %v1252
        %1254 = vmatmul.bf16.gmra.mxu0 %v1101
        %v1255 = vpop.f32.mrf.mxu0
        %v1256 = vadd.f32 0.0, %v1255
        %v1257 = vpop.f32.mrf.mxu0
        %v1258 = vadd.f32 0.0, %v1257
        %1259 = vmatmul.bf16.gmra.mxu0 %v1104
        %v1260 = vpop.f32.mrf.mxu0
        %v1261 = vadd.f32 0.0, %v1260
        %v1262 = vpop.f32.mrf.mxu0
        %v1263 = vadd.f32 0.0, %v1262
        %1264 = vmatmul.bf16.gmra.mxu0 %v1107
        %v1265 = vpop.f32.mrf.mxu0
        %v1266 = vadd.f32 0.0, %v1265
        %v1267 = vpop.f32.mrf.mxu0
        %v1268 = vadd.f32 0.0, %v1267
        %1269 = vmatmul.bf16.gmra.mxu0 %v1110
        %v1270 = vpop.f32.mrf.mxu0
        %v1271 = vadd.f32 0.0, %v1270
        %v1272 = vpop.f32.mrf.mxu0
        %v1273 = vadd.f32 0.0, %v1272
        %1274 = vmatmul.bf16.gmra.mxu0 %v1113
        %v1275 = vpop.f32.mrf.mxu0
        %v1276 = vadd.f32 0.0, %v1275
        %v1277 = vpop.f32.mrf.mxu0
        %v1278 = vadd.f32 0.0, %v1277
        %1279 = vmatmul.bf16.gmra.mxu0 %v1116
        %v1280 = vpop.f32.mrf.mxu0
        %v1281 = vadd.f32 0.0, %v1280
        %v1282 = vpop.f32.mrf.mxu0
        %v1283 = vadd.f32 0.0, %v1282
        %1284 = vmatmul.bf16.gmra.mxu0 %v1119
        %v1285 = vpop.f32.mrf.mxu0
        %v1286 = vadd.f32 0.0, %v1285
        %v1287 = vpop.f32.mrf.mxu0
        %v1288 = vadd.f32 0.0, %v1287
        %1289 = vmatmul.bf16.gmra.mxu0 %v1122
        %v1290 = vpop.f32.mrf.mxu0
        %v1291 = vadd.f32 0.0, %v1290
        %v1292 = vpop.f32.mrf.mxu0
        %v1293 = vadd.f32 0.0, %v1292
        %1294 = vmatmul.bf16.gmra.mxu0 %v1125
        %v1295 = vpop.f32.mrf.mxu0
        %v1296 = vadd.f32 0.0, %v1295
        %v1297 = vpop.f32.mrf.mxu0
        %v1298 = vadd.f32 0.0, %v1297
        %1299 = vmatmul.bf16.gmra.mxu0 %v1128
        %v1300 = vpop.f32.mrf.mxu0
        %v1301 = vadd.f32 0.0, %v1300
        %v1302 = vpop.f32.mrf.mxu0
        %v1303 = vadd.f32 0.0, %v1302
        %1304 = vmatmul.bf16.gmra.mxu0 %v1131
        %v1305 = vpop.f32.mrf.mxu0
        %v1306 = vadd.f32 0.0, %v1305
        %v1307 = vpop.f32.mrf.mxu0
        %v1308 = vadd.f32 0.0, %v1307
        %1309 = vmatmul.bf16.gmra.mxu0 %v1134
        %v1310 = vpop.f32.mrf.mxu0
        %v1311 = vadd.f32 0.0, %v1310
        %v1312 = vpop.f32.mrf.mxu0
        %v1313 = vadd.f32 0.0, %v1312
        %1314 = vmatmul.bf16.gmra.mxu0 %v1137
        %v1315 = vpop.f32.mrf.mxu0
        %v1316 = vadd.f32 0.0, %v1315
        %v1317 = vpop.f32.mrf.mxu0
        %v1318 = vadd.f32 0.0, %v1317
        %1319 = vmatmul.bf16.gmra.mxu0 %v1140
        %v1320 = vpop.f32.mrf.mxu0
        %v1321 = vadd.f32 0.0, %v1320
        %v1322 = vpop.f32.mrf.mxu0
        %v1323 = vadd.f32 0.0, %v1322
        %1324 = vdwg.mxu0
        %v1325 = vmax.f32 %v1157, %v1246
        %1326 = vmax.xlane.f32.xlu0 %v1325
        %v1327 = vpop.xlane.xlu0 %1326
        %v1328 = vmax.f32 %v1159, %v1248
        %1329 = vmax.xlane.f32.xlu0 %v1328
        %v1330 = vpop.xlane.xlu0 %1329
        %v1331 = vmax.f32 %v1162, %v1251
        %1332 = vmax.xlane.f32.xlu0 %v1331
        %v1333 = vpop.xlane.xlu0 %1332
        %v1334 = vmax.f32 %v1164, %v1253
        %1335 = vmax.xlane.f32.xlu0 %v1334
        %v1336 = vpop.xlane.xlu0 %1335
        %v1337 = vmax.f32 %v1167, %v1256
        %1338 = vmax.xlane.f32.xlu0 %v1337
        %v1339 = vpop.xlane.xlu0 %1338
        %v1340 = vmax.f32 %v1169, %v1258
        %1341 = vmax.xlane.f32.xlu0 %v1340
        %v1342 = vpop.xlane.xlu0 %1341
        %v1343 = vmax.f32 %v1172, %v1261
        %1344 = vmax.xlane.f32.xlu0 %v1343
        %v1345 = vpop.xlane.xlu0 %1344
        %v1346 = vmax.f32 %v1174, %v1263
        %1347 = vmax.xlane.f32.xlu0 %v1346
        %v1348 = vpop.xlane.xlu0 %1347
        %v1349 = vmax.f32 %v1177, %v1266
        %1350 = vmax.xlane.f32.xlu0 %v1349
        %v1351 = vpop.xlane.xlu0 %1350
        %v1352 = vmax.f32 %v1179, %v1268
        %1353 = vmax.xlane.f32.xlu0 %v1352
        %v1354 = vpop.xlane.xlu0 %1353
        %v1355 = vmax.f32 %v1182, %v1271
        %1356 = vmax.xlane.f32.xlu0 %v1355
        %v1357 = vpop.xlane.xlu0 %1356
        %v1358 = vmax.f32 %v1184, %v1273
        %1359 = vmax.xlane.f32.xlu0 %v1358
        %v1360 = vpop.xlane.xlu0 %1359
        %v1361 = vmax.f32 %v1187, %v1276
        %1362 = vmax.xlane.f32.xlu0 %v1361
        %v1363 = vpop.xlane.xlu0 %1362
        %v1364 = vmax.f32 %v1189, %v1278
        %1365 = vmax.xlane.f32.xlu0 %v1364
        %v1366 = vpop.xlane.xlu0 %1365
        %v1367 = vmax.f32 %v1192, %v1281
        %1368 = vmax.xlane.f32.xlu0 %v1367
        %v1369 = vpop.xlane.xlu0 %1368
        %v1370 = vmax.f32 %v1194, %v1283
        %1371 = vmax.xlane.f32.xlu0 %v1370
        %v1372 = vpop.xlane.xlu0 %1371
        %v1373 = vmax.f32 %v1197, %v1286
        %1374 = vmax.xlane.f32.xlu0 %v1373
        %v1375 = vpop.xlane.xlu0 %1374
        %v1376 = vmax.f32 %v1199, %v1288
        %1377 = vmax.xlane.f32.xlu0 %v1376
        %v1378 = vpop.xlane.xlu0 %1377
        %v1379 = vmax.f32 %v1202, %v1291
        %1380 = vmax.xlane.f32.xlu0 %v1379
        %v1381 = vpop.xlane.xlu0 %1380
        %v1382 = vmax.f32 %v1204, %v1293
        %1383 = vmax.xlane.f32.xlu0 %v1382
        %v1384 = vpop.xlane.xlu0 %1383
        %v1385 = vmax.f32 %v1207, %v1296
        %1386 = vmax.xlane.f32.xlu0 %v1385
        %v1387 = vpop.xlane.xlu0 %1386
        %v1388 = vmax.f32 %v1209, %v1298
        %1389 = vmax.xlane.f32.xlu0 %v1388
        %v1390 = vpop.xlane.xlu0 %1389
        %v1391 = vmax.f32 %v1212, %v1301
        %1392 = vmax.xlane.f32.xlu0 %v1391
        %v1393 = vpop.xlane.xlu0 %1392
        %v1394 = vmax.f32 %v1214, %v1303
        %1395 = vmax.xlane.f32.xlu0 %v1394
        %v1396 = vpop.xlane.xlu0 %1395
        %v1397 = vmax.f32 %v1217, %v1306
        %1398 = vmax.xlane.f32.xlu0 %v1397
        %v1399 = vpop.xlane.xlu0 %1398
        %v1400 = vmax.f32 %v1219, %v1308
        %1401 = vmax.xlane.f32.xlu0 %v1400
        %v1402 = vpop.xlane.xlu0 %1401
        %v1403 = vmax.f32 %v1222, %v1311
        %1404 = vmax.xlane.f32.xlu0 %v1403
        %v1405 = vpop.xlane.xlu0 %1404
        %v1406 = vmax.f32 %v1224, %v1313
        %1407 = vmax.xlane.f32.xlu0 %v1406
        %v1408 = vpop.xlane.xlu0 %1407
        %v1409 = vmax.f32 %v1227, %v1316
        %1410 = vmax.xlane.f32.xlu0 %v1409
        %v1411 = vpop.xlane.xlu0 %1410
        %v1412 = vmax.f32 %v1229, %v1318
        %1413 = vmax.xlane.f32.xlu0 %v1412
        %v1414 = vpop.xlane.xlu0 %1413
        %v1415 = vmax.f32 %v1232, %v1321
        %1416 = vmax.xlane.f32.xlu0 %v1415
        %v1417 = vpop.xlane.xlu0 %1416
        %v1418 = vmax.f32 %v1234, %v1323
        %1419 = vmax.xlane.f32.xlu0 %v1418
        %v1420 = vpop.xlane.xlu0 %1419
        %v1421 = vsub.f32 %v1157, %v1327
        %v1422 = vsub.f32 %v1246, %v1327
        %v1423 = vsub.f32 %v1159, %v1330
        %v1424 = vsub.f32 %v1248, %v1330
        %v1425 = vsub.f32 %v1162, %v1333
        %v1426 = vsub.f32 %v1251, %v1333
        %v1427 = vsub.f32 %v1164, %v1336
        %v1428 = vsub.f32 %v1253, %v1336
        %v1429 = vsub.f32 %v1167, %v1339
        %v1430 = vsub.f32 %v1256, %v1339
        %v1431 = vsub.f32 %v1169, %v1342
        %v1432 = vsub.f32 %v1258, %v1342
        %v1433 = vsub.f32 %v1172, %v1345
        %v1434 = vsub.f32 %v1261, %v1345
        %v1435 = vsub.f32 %v1174, %v1348
        %v1436 = vsub.f32 %v1263, %v1348
        %v1437 = vsub.f32 %v1177, %v1351
        %v1438 = vsub.f32 %v1266, %v1351
        %v1439 = vsub.f32 %v1179, %v1354
        %v1440 = vsub.f32 %v1268, %v1354
        %v1441 = vsub.f32 %v1182, %v1357
        %v1442 = vsub.f32 %v1271, %v1357
        %v1443 = vsub.f32 %v1184, %v1360
        %v1444 = vsub.f32 %v1273, %v1360
        %v1445 = vsub.f32 %v1187, %v1363
        %v1446 = vsub.f32 %v1276, %v1363
        %v1447 = vsub.f32 %v1189, %v1366
        %v1448 = vsub.f32 %v1278, %v1366
        %v1449 = vsub.f32 %v1192, %v1369
        %v1450 = vsub.f32 %v1281, %v1369
        %v1451 = vsub.f32 %v1194, %v1372
        %v1452 = vsub.f32 %v1283, %v1372
        %v1453 = vsub.f32 %v1197, %v1375
        %v1454 = vsub.f32 %v1286, %v1375
        %v1455 = vsub.f32 %v1199, %v1378
        %v1456 = vsub.f32 %v1288, %v1378
        %v1457 = vsub.f32 %v1202, %v1381
        %v1458 = vsub.f32 %v1291, %v1381
        %v1459 = vsub.f32 %v1204, %v1384
        %v1460 = vsub.f32 %v1293, %v1384
        %v1461 = vsub.f32 %v1207, %v1387
        %v1462 = vsub.f32 %v1296, %v1387
        %v1463 = vsub.f32 %v1209, %v1390
        %v1464 = vsub.f32 %v1298, %v1390
        %v1465 = vsub.f32 %v1212, %v1393
        %v1466 = vsub.f32 %v1301, %v1393
        %v1467 = vsub.f32 %v1214, %v1396
        %v1468 = vsub.f32 %v1303, %v1396
        %v1469 = vsub.f32 %v1217, %v1399
        %v1470 = vsub.f32 %v1306, %v1399
        %v1471 = vsub.f32 %v1219, %v1402
        %v1472 = vsub.f32 %v1308, %v1402
        %v1473 = vsub.f32 %v1222, %v1405
        %v1474 = vsub.f32 %v1311, %v1405
        %v1475 = vsub.f32 %v1224, %v1408
        %v1476 = vsub.f32 %v1313, %v1408
        %v1477 = vsub.f32 %v1227, %v1411
        %v1478 = vsub.f32 %v1316, %v1411
        %v1479 = vsub.f32 %v1229, %v1414
        %v1480 = vsub.f32 %v1318, %v1414
        %v1481 = vsub.f32 %v1232, %v1417
        %v1482 = vsub.f32 %v1321, %v1417
        %v1483 = vsub.f32 %v1234, %v1420
        %v1484 = vsub.f32 %v1323, %v1420
        %v1485 = vmul.f32 %v1421, 1.442695
        %v1486 = vpow.pop %v1485
        %v1487 = vmul.f32 %v1422, 1.442695
        %v1488 = vpow.pop %v1487
        %v1489 = vmul.f32 %v1423, 1.442695
        %v1490 = vpow.pop %v1489
        %v1491 = vmul.f32 %v1424, 1.442695
        %v1492 = vpow.pop %v1491
        %v1493 = vmul.f32 %v1425, 1.442695
        %v1494 = vpow.pop %v1493
        %v1495 = vmul.f32 %v1426, 1.442695
        %v1496 = vpow.pop %v1495
        %v1497 = vmul.f32 %v1427, 1.442695
        %v1498 = vpow.pop %v1497
        %v1499 = vmul.f32 %v1428, 1.442695
        %v1500 = vpow.pop %v1499
        %v1501 = vmul.f32 %v1429, 1.442695
        %v1502 = vpow.pop %v1501
        %v1503 = vmul.f32 %v1430, 1.442695
        %v1504 = vpow.pop %v1503
        %v1505 = vmul.f32 %v1431, 1.442695
        %v1506 = vpow.pop %v1505
        %v1507 = vmul.f32 %v1432, 1.442695
        %v1508 = vpow.pop %v1507
        %v1509 = vmul.f32 %v1433, 1.442695
        %v1510 = vpow.pop %v1509
        %v1511 = vmul.f32 %v1434, 1.442695
        %v1512 = vpow.pop %v1511
        %v1513 = vmul.f32 %v1435, 1.442695
        %v1514 = vpow.pop %v1513
        %v1515 = vmul.f32 %v1436, 1.442695
        %v1516 = vpow.pop %v1515
        %v1517 = vmul.f32 %v1437, 1.442695
        %v1518 = vpow.pop %v1517
        %v1519 = vmul.f32 %v1438, 1.442695
        %v1520 = vpow.pop %v1519
        %v1521 = vmul.f32 %v1439, 1.442695
        %v1522 = vpow.pop %v1521
        %v1523 = vmul.f32 %v1440, 1.442695
        %v1524 = vpow.pop %v1523
        %v1525 = vmul.f32 %v1441, 1.442695
        %v1526 = vpow.pop %v1525
        %v1527 = vmul.f32 %v1442, 1.442695
        %v1528 = vpow.pop %v1527
        %v1529 = vmul.f32 %v1443, 1.442695
        %v1530 = vpow.pop %v1529
        %v1531 = vmul.f32 %v1444, 1.442695
        %v1532 = vpow.pop %v1531
        %v1533 = vmul.f32 %v1445, 1.442695
        %v1534 = vpow.pop %v1533
        %v1535 = vmul.f32 %v1446, 1.442695
        %v1536 = vpow.pop %v1535
        %v1537 = vmul.f32 %v1447, 1.442695
        %v1538 = vpow.pop %v1537
        %v1539 = vmul.f32 %v1448, 1.442695
        %v1540 = vpow.pop %v1539
        %v1541 = vmul.f32 %v1449, 1.442695
        %v1542 = vpow.pop %v1541
        %v1543 = vmul.f32 %v1450, 1.442695
        %v1544 = vpow.pop %v1543
        %v1545 = vmul.f32 %v1451, 1.442695
        %v1546 = vpow.pop %v1545
        %v1547 = vmul.f32 %v1452, 1.442695
        %v1548 = vpow.pop %v1547
        %v1549 = vmul.f32 %v1453, 1.442695
        %v1550 = vpow.pop %v1549
        %v1551 = vmul.f32 %v1454, 1.442695
        %v1552 = vpow.pop %v1551
        %v1553 = vmul.f32 %v1455, 1.442695
        %v1554 = vpow.pop %v1553
        %v1555 = vmul.f32 %v1456, 1.442695
        %v1556 = vpow.pop %v1555
        %v1557 = vmul.f32 %v1457, 1.442695
        %v1558 = vpow.pop %v1557
        %v1559 = vmul.f32 %v1458, 1.442695
        %v1560 = vpow.pop %v1559
        %v1561 = vmul.f32 %v1459, 1.442695
        %v1562 = vpow.pop %v1561
        %v1563 = vmul.f32 %v1460, 1.442695
        %v1564 = vpow.pop %v1563
        %v1565 = vmul.f32 %v1461, 1.442695
        %v1566 = vpow.pop %v1565
        %v1567 = vmul.f32 %v1462, 1.442695
        %v1568 = vpow.pop %v1567
        %v1569 = vmul.f32 %v1463, 1.442695
        %v1570 = vpow.pop %v1569
        %v1571 = vmul.f32 %v1464, 1.442695
        %v1572 = vpow.pop %v1571
        %v1573 = vmul.f32 %v1465, 1.442695
        %v1574 = vpow.pop %v1573
        %v1575 = vmul.f32 %v1466, 1.442695
        %v1576 = vpow.pop %v1575
        %v1577 = vmul.f32 %v1467, 1.442695
        %v1578 = vpow.pop %v1577
        %v1579 = vmul.f32 %v1468, 1.442695
        %v1580 = vpow.pop %v1579
        %v1581 = vmul.f32 %v1469, 1.442695
        %v1582 = vpow.pop %v1581
        %v1583 = vmul.f32 %v1470, 1.442695
        %v1584 = vpow.pop %v1583
        %v1585 = vmul.f32 %v1471, 1.442695
        %v1586 = vpow.pop %v1585
        %v1587 = vmul.f32 %v1472, 1.442695
        %v1588 = vpow.pop %v1587
        %v1589 = vmul.f32 %v1473, 1.442695
        %v1590 = vpow.pop %v1589
        %v1591 = vmul.f32 %v1474, 1.442695
        %v1592 = vpow.pop %v1591
        %v1593 = vmul.f32 %v1475, 1.442695
        %v1594 = vpow.pop %v1593
        %v1595 = vmul.f32 %v1476, 1.442695
        %v1596 = vpow.pop %v1595
        %v1597 = vmul.f32 %v1477, 1.442695
        %v1598 = vpow.pop %v1597
        %v1599 = vmul.f32 %v1478, 1.442695
        %v1600 = vpow.pop %v1599
        %v1601 = vmul.f32 %v1479, 1.442695
        %v1602 = vpow.pop %v1601
        %v1603 = vmul.f32 %v1480, 1.442695
        %v1604 = vpow.pop %v1603
        %v1605 = vmul.f32 %v1481, 1.442695
        %v1606 = vpow.pop %v1605
        %v1607 = vmul.f32 %v1482, 1.442695
        %v1608 = vpow.pop %v1607
        %v1609 = vmul.f32 %v1483, 1.442695
        %v1610 = vpow.pop %v1609
        %v1611 = vmul.f32 %v1484, 1.442695
        %v1612 = vpow.pop %v1611
        %v1613 = vadd.f32 %v1486, %v1488
        %1614 = vadd.xlane.f32.xlu0 %v1613
        %v1615 = vpop.xlane.xlu0 %1614
        %v1616 = vadd.f32 %v1490, %v1492
        %1617 = vadd.xlane.f32.xlu0 %v1616
        %v1618 = vpop.xlane.xlu0 %1617
        %v1619 = vadd.f32 %v1494, %v1496
        %1620 = vadd.xlane.f32.xlu0 %v1619
        %v1621 = vpop.xlane.xlu0 %1620
        %v1622 = vadd.f32 %v1498, %v1500
        %1623 = vadd.xlane.f32.xlu0 %v1622
        %v1624 = vpop.xlane.xlu0 %1623
        %v1625 = vadd.f32 %v1502, %v1504
        %1626 = vadd.xlane.f32.xlu0 %v1625
        %v1627 = vpop.xlane.xlu0 %1626
        %v1628 = vadd.f32 %v1506, %v1508
        %1629 = vadd.xlane.f32.xlu0 %v1628
        %v1630 = vpop.xlane.xlu0 %1629
        %v1631 = vadd.f32 %v1510, %v1512
        %1632 = vadd.xlane.f32.xlu0 %v1631
        %v1633 = vpop.xlane.xlu0 %1632
        %v1634 = vadd.f32 %v1514, %v1516
        %1635 = vadd.xlane.f32.xlu0 %v1634
        %v1636 = vpop.xlane.xlu0 %1635
        %v1637 = vadd.f32 %v1518, %v1520
        %1638 = vadd.xlane.f32.xlu0 %v1637
        %v1639 = vpop.xlane.xlu0 %1638
        %v1640 = vadd.f32 %v1522, %v1524
        %1641 = vadd.xlane.f32.xlu0 %v1640
        %v1642 = vpop.xlane.xlu0 %1641
        %v1643 = vadd.f32 %v1526, %v1528
        %1644 = vadd.xlane.f32.xlu0 %v1643
        %v1645 = vpop.xlane.xlu0 %1644
        %v1646 = vadd.f32 %v1530, %v1532
        %1647 = vadd.xlane.f32.xlu0 %v1646
        %v1648 = vpop.xlane.xlu0 %1647
        %v1649 = vadd.f32 %v1534, %v1536
        %1650 = vadd.xlane.f32.xlu0 %v1649
        %v1651 = vpop.xlane.xlu0 %1650
        %v1652 = vadd.f32 %v1538, %v1540
        %1653 = vadd.xlane.f32.xlu0 %v1652
        %v1654 = vpop.xlane.xlu0 %1653
        %v1655 = vadd.f32 %v1542, %v1544
        %1656 = vadd.xlane.f32.xlu0 %v1655
        %v1657 = vpop.xlane.xlu0 %1656
        %v1658 = vadd.f32 %v1546, %v1548
        %1659 = vadd.xlane.f32.xlu0 %v1658
        %v1660 = vpop.xlane.xlu0 %1659
        %v1661 = vadd.f32 %v1550, %v1552
        %1662 = vadd.xlane.f32.xlu0 %v1661
        %v1663 = vpop.xlane.xlu0 %1662
        %v1664 = vadd.f32 %v1554, %v1556
        %1665 = vadd.xlane.f32.xlu0 %v1664
        %v1666 = vpop.xlane.xlu0 %1665
        %v1667 = vadd.f32 %v1558, %v1560
        %1668 = vadd.xlane.f32.xlu0 %v1667
        %v1669 = vpop.xlane.xlu0 %1668
        %v1670 = vadd.f32 %v1562, %v1564
        %1671 = vadd.xlane.f32.xlu0 %v1670
        %v1672 = vpop.xlane.xlu0 %1671
        %v1673 = vadd.f32 %v1566, %v1568
        %1674 = vadd.xlane.f32.xlu0 %v1673
        %v1675 = vpop.xlane.xlu0 %1674
        %v1676 = vadd.f32 %v1570, %v1572
        %1677 = vadd.xlane.f32.xlu0 %v1676
        %v1678 = vpop.xlane.xlu0 %1677
        %v1679 = vadd.f32 %v1574, %v1576
        %1680 = vadd.xlane.f32.xlu0 %v1679
        %v1681 = vpop.xlane.xlu0 %1680
        %v1682 = vadd.f32 %v1578, %v1580
        %1683 = vadd.xlane.f32.xlu0 %v1682
        %v1684 = vpop.xlane.xlu0 %1683
        %v1685 = vadd.f32 %v1582, %v1584
        %1686 = vadd.xlane.f32.xlu0 %v1685
        %v1687 = vpop.xlane.xlu0 %1686
        %v1688 = vadd.f32 %v1586, %v1588
        %1689 = vadd.xlane.f32.xlu0 %v1688
        %v1690 = vpop.xlane.xlu0 %1689
        %v1691 = vadd.f32 %v1590, %v1592
        %1692 = vadd.xlane.f32.xlu0 %v1691
        %v1693 = vpop.xlane.xlu0 %1692
        %v1694 = vadd.f32 %v1594, %v1596
        %1695 = vadd.xlane.f32.xlu0 %v1694
        %v1696 = vpop.xlane.xlu0 %1695
        %v1697 = vadd.f32 %v1598, %v1600
        %1698 = vadd.xlane.f32.xlu0 %v1697
        %v1699 = vpop.xlane.xlu0 %1698
        %v1700 = vadd.f32 %v1602, %v1604
        %1701 = vadd.xlane.f32.xlu0 %v1700
        %v1702 = vpop.xlane.xlu0 %1701
        %v1703 = vadd.f32 %v1606, %v1608
        %1704 = vadd.xlane.f32.xlu0 %v1703
        %v1705 = vpop.xlane.xlu0 %1704
        %v1706 = vadd.f32 %v1610, %v1612
        %1707 = vadd.xlane.f32.xlu0 %v1706
        %v1708 = vpop.xlane.xlu0 %1707
        %v1709 = vrcp.pop %v1615
        %v1710 = vmul.f32 %v1615, %v1709
        %v1711 = vsub.f32 1.0, %v1710
        %v1712 = vmul.f32 %v1709, %v1711
        %v1713 = vadd.f32 %v1709, %v1712
        %vm1714 = vweird.f32 %v1615
        %vm1715 = vweird.f32 %v1709
        %vm1716 = vmor %vm1714, %vm1715
        %v1717 = vsel %vm1716, %v1709, %v1713
        %v1718 = vand.u32 2147483647, %v1615
        %vm1719 = vcmp.eq.f32.partialorder %v1718, 8.507059e+37
        %v1720 = vand.u32 %v1615, 2147483648
        %v1721 = vor.u32 1.1754944e-38, %v1720
        %v1722 = vsel %vm1719, %v1721, %v1717
        %v1723 = vrcp.pop %v1618
        %v1724 = vmul.f32 %v1618, %v1723
        %v1725 = vsub.f32 1.0, %v1724
        %v1726 = vmul.f32 %v1723, %v1725
        %v1727 = vadd.f32 %v1723, %v1726
        %vm1728 = vweird.f32 %v1618
        %vm1729 = vweird.f32 %v1723
        %vm1730 = vmor %vm1728, %vm1729
        %v1731 = vsel %vm1730, %v1723, %v1727
        %v1732 = vand.u32 2147483647, %v1618
        %vm1733 = vcmp.eq.f32.partialorder %v1732, 8.507059e+37
        %v1734 = vand.u32 %v1618, 2147483648
        %v1735 = vor.u32 1.1754944e-38, %v1734
        %v1736 = vsel %vm1733, %v1735, %v1731
        %v1737 = vrcp.pop %v1621
        %v1738 = vmul.f32 %v1621, %v1737
        %v1739 = vsub.f32 1.0, %v1738
        %v1740 = vmul.f32 %v1737, %v1739
        %v1741 = vadd.f32 %v1737, %v1740
        %vm1742 = vweird.f32 %v1621
        %vm1743 = vweird.f32 %v1737
        %vm1744 = vmor %vm1742, %vm1743
        %v1745 = vsel %vm1744, %v1737, %v1741
        %v1746 = vand.u32 2147483647, %v1621
        %vm1747 = vcmp.eq.f32.partialorder %v1746, 8.507059e+37
        %v1748 = vand.u32 %v1621, 2147483648
        %v1749 = vor.u32 1.1754944e-38, %v1748
        %v1750 = vsel %vm1747, %v1749, %v1745
        %v1751 = vrcp.pop %v1624
        %v1752 = vmul.f32 %v1624, %v1751
        %v1753 = vsub.f32 1.0, %v1752
        %v1754 = vmul.f32 %v1751, %v1753
        %v1755 = vadd.f32 %v1751, %v1754
        %vm1756 = vweird.f32 %v1624
        %vm1757 = vweird.f32 %v1751
        %vm1758 = vmor %vm1756, %vm1757
        %v1759 = vsel %vm1758, %v1751, %v1755
        %v1760 = vand.u32 2147483647, %v1624
        %vm1761 = vcmp.eq.f32.partialorder %v1760, 8.507059e+37
        %v1762 = vand.u32 %v1624, 2147483648
        %v1763 = vor.u32 1.1754944e-38, %v1762
        %v1764 = vsel %vm1761, %v1763, %v1759
        %v1765 = vrcp.pop %v1627
        %v1766 = vmul.f32 %v1627, %v1765
        %v1767 = vsub.f32 1.0, %v1766
        %v1768 = vmul.f32 %v1765, %v1767
        %v1769 = vadd.f32 %v1765, %v1768
        %vm1770 = vweird.f32 %v1627
        %vm1771 = vweird.f32 %v1765
        %vm1772 = vmor %vm1770, %vm1771
        %v1773 = vsel %vm1772, %v1765, %v1769
        %v1774 = vand.u32 2147483647, %v1627
        %vm1775 = vcmp.eq.f32.partialorder %v1774, 8.507059e+37
        %v1776 = vand.u32 %v1627, 2147483648
        %v1777 = vor.u32 1.1754944e-38, %v1776
        %v1778 = vsel %vm1775, %v1777, %v1773
        %v1779 = vrcp.pop %v1630
        %v1780 = vmul.f32 %v1630, %v1779
        %v1781 = vsub.f32 1.0, %v1780
        %v1782 = vmul.f32 %v1779, %v1781
        %v1783 = vadd.f32 %v1779, %v1782
        %vm1784 = vweird.f32 %v1630
        %vm1785 = vweird.f32 %v1779
        %vm1786 = vmor %vm1784, %vm1785
        %v1787 = vsel %vm1786, %v1779, %v1783
        %v1788 = vand.u32 2147483647, %v1630
        %vm1789 = vcmp.eq.f32.partialorder %v1788, 8.507059e+37
        %v1790 = vand.u32 %v1630, 2147483648
        %v1791 = vor.u32 1.1754944e-38, %v1790
        %v1792 = vsel %vm1789, %v1791, %v1787
        %v1793 = vrcp.pop %v1633
        %v1794 = vmul.f32 %v1633, %v1793
        %v1795 = vsub.f32 1.0, %v1794
        %v1796 = vmul.f32 %v1793, %v1795
        %v1797 = vadd.f32 %v1793, %v1796
        %vm1798 = vweird.f32 %v1633
        %vm1799 = vweird.f32 %v1793
        %vm1800 = vmor %vm1798, %vm1799
        %v1801 = vsel %vm1800, %v1793, %v1797
        %v1802 = vand.u32 2147483647, %v1633
        %vm1803 = vcmp.eq.f32.partialorder %v1802, 8.507059e+37
        %v1804 = vand.u32 %v1633, 2147483648
        %v1805 = vor.u32 1.1754944e-38, %v1804
        %v1806 = vsel %vm1803, %v1805, %v1801
        %v1807 = vrcp.pop %v1636
        %v1808 = vmul.f32 %v1636, %v1807
        %v1809 = vsub.f32 1.0, %v1808
        %v1810 = vmul.f32 %v1807, %v1809
        %v1811 = vadd.f32 %v1807, %v1810
        %vm1812 = vweird.f32 %v1636
        %vm1813 = vweird.f32 %v1807
        %vm1814 = vmor %vm1812, %vm1813
        %v1815 = vsel %vm1814, %v1807, %v1811
        %v1816 = vand.u32 2147483647, %v1636
        %vm1817 = vcmp.eq.f32.partialorder %v1816, 8.507059e+37
        %v1818 = vand.u32 %v1636, 2147483648
        %v1819 = vor.u32 1.1754944e-38, %v1818
        %v1820 = vsel %vm1817, %v1819, %v1815
        %v1821 = vrcp.pop %v1639
        %v1822 = vmul.f32 %v1639, %v1821
        %v1823 = vsub.f32 1.0, %v1822
        %v1824 = vmul.f32 %v1821, %v1823
        %v1825 = vadd.f32 %v1821, %v1824
        %vm1826 = vweird.f32 %v1639
        %vm1827 = vweird.f32 %v1821
        %vm1828 = vmor %vm1826, %vm1827
        %v1829 = vsel %vm1828, %v1821, %v1825
        %v1830 = vand.u32 2147483647, %v1639
        %vm1831 = vcmp.eq.f32.partialorder %v1830, 8.507059e+37
        %v1832 = vand.u32 %v1639, 2147483648
        %v1833 = vor.u32 1.1754944e-38, %v1832
        %v1834 = vsel %vm1831, %v1833, %v1829
        %v1835 = vrcp.pop %v1642
        %v1836 = vmul.f32 %v1642, %v1835
        %v1837 = vsub.f32 1.0, %v1836
        %v1838 = vmul.f32 %v1835, %v1837
        %v1839 = vadd.f32 %v1835, %v1838
        %vm1840 = vweird.f32 %v1642
        %vm1841 = vweird.f32 %v1835
        %vm1842 = vmor %vm1840, %vm1841
        %v1843 = vsel %vm1842, %v1835, %v1839
        %v1844 = vand.u32 2147483647, %v1642
        %vm1845 = vcmp.eq.f32.partialorder %v1844, 8.507059e+37
        %v1846 = vand.u32 %v1642, 2147483648
        %v1847 = vor.u32 1.1754944e-38, %v1846
        %v1848 = vsel %vm1845, %v1847, %v1843
        %v1849 = vrcp.pop %v1645
        %v1850 = vmul.f32 %v1645, %v1849
        %v1851 = vsub.f32 1.0, %v1850
        %v1852 = vmul.f32 %v1849, %v1851
        %v1853 = vadd.f32 %v1849, %v1852
        %vm1854 = vweird.f32 %v1645
        %vm1855 = vweird.f32 %v1849
        %vm1856 = vmor %vm1854, %vm1855
        %v1857 = vsel %vm1856, %v1849, %v1853
        %v1858 = vand.u32 2147483647, %v1645
        %vm1859 = vcmp.eq.f32.partialorder %v1858, 8.507059e+37
        %v1860 = vand.u32 %v1645, 2147483648
        %v1861 = vor.u32 1.1754944e-38, %v1860
        %v1862 = vsel %vm1859, %v1861, %v1857
        %v1863 = vrcp.pop %v1648
        %v1864 = vmul.f32 %v1648, %v1863
        %v1865 = vsub.f32 1.0, %v1864
        %v1866 = vmul.f32 %v1863, %v1865
        %v1867 = vadd.f32 %v1863, %v1866
        %vm1868 = vweird.f32 %v1648
        %vm1869 = vweird.f32 %v1863
        %vm1870 = vmor %vm1868, %vm1869
        %v1871 = vsel %vm1870, %v1863, %v1867
        %v1872 = vand.u32 2147483647, %v1648
        %vm1873 = vcmp.eq.f32.partialorder %v1872, 8.507059e+37
        %v1874 = vand.u32 %v1648, 2147483648
        %v1875 = vor.u32 1.1754944e-38, %v1874
        %v1876 = vsel %vm1873, %v1875, %v1871
        %v1877 = vrcp.pop %v1651
        %v1878 = vmul.f32 %v1651, %v1877
        %v1879 = vsub.f32 1.0, %v1878
        %v1880 = vmul.f32 %v1877, %v1879
        %v1881 = vadd.f32 %v1877, %v1880
        %vm1882 = vweird.f32 %v1651
        %vm1883 = vweird.f32 %v1877
        %vm1884 = vmor %vm1882, %vm1883
        %v1885 = vsel %vm1884, %v1877, %v1881
        %v1886 = vand.u32 2147483647, %v1651
        %vm1887 = vcmp.eq.f32.partialorder %v1886, 8.507059e+37
        %v1888 = vand.u32 %v1651, 2147483648
        %v1889 = vor.u32 1.1754944e-38, %v1888
        %v1890 = vsel %vm1887, %v1889, %v1885
        %v1891 = vrcp.pop %v1654
        %v1892 = vmul.f32 %v1654, %v1891
        %v1893 = vsub.f32 1.0, %v1892
        %v1894 = vmul.f32 %v1891, %v1893
        %v1895 = vadd.f32 %v1891, %v1894
        %vm1896 = vweird.f32 %v1654
        %vm1897 = vweird.f32 %v1891
        %vm1898 = vmor %vm1896, %vm1897
        %v1899 = vsel %vm1898, %v1891, %v1895
        %v1900 = vand.u32 2147483647, %v1654
        %vm1901 = vcmp.eq.f32.partialorder %v1900, 8.507059e+37
        %v1902 = vand.u32 %v1654, 2147483648
        %v1903 = vor.u32 1.1754944e-38, %v1902
        %v1904 = vsel %vm1901, %v1903, %v1899
        %v1905 = vrcp.pop %v1657
        %v1906 = vmul.f32 %v1657, %v1905
        %v1907 = vsub.f32 1.0, %v1906
        %v1908 = vmul.f32 %v1905, %v1907
        %v1909 = vadd.f32 %v1905, %v1908
        %vm1910 = vweird.f32 %v1657
        %vm1911 = vweird.f32 %v1905
        %vm1912 = vmor %vm1910, %vm1911
        %v1913 = vsel %vm1912, %v1905, %v1909
        %v1914 = vand.u32 2147483647, %v1657
        %vm1915 = vcmp.eq.f32.partialorder %v1914, 8.507059e+37
        %v1916 = vand.u32 %v1657, 2147483648
        %v1917 = vor.u32 1.1754944e-38, %v1916
        %v1918 = vsel %vm1915, %v1917, %v1913
        %v1919 = vrcp.pop %v1660
        %v1920 = vmul.f32 %v1660, %v1919
        %v1921 = vsub.f32 1.0, %v1920
        %v1922 = vmul.f32 %v1919, %v1921
        %v1923 = vadd.f32 %v1919, %v1922
        %vm1924 = vweird.f32 %v1660
        %vm1925 = vweird.f32 %v1919
        %vm1926 = vmor %vm1924, %vm1925
        %v1927 = vsel %vm1926, %v1919, %v1923
        %v1928 = vand.u32 2147483647, %v1660
        %vm1929 = vcmp.eq.f32.partialorder %v1928, 8.507059e+37
        %v1930 = vand.u32 %v1660, 2147483648
        %v1931 = vor.u32 1.1754944e-38, %v1930
        %v1932 = vsel %vm1929, %v1931, %v1927
        %v1933 = vrcp.pop %v1663
        %v1934 = vmul.f32 %v1663, %v1933
        %v1935 = vsub.f32 1.0, %v1934
        %v1936 = vmul.f32 %v1933, %v1935
        %v1937 = vadd.f32 %v1933, %v1936
        %vm1938 = vweird.f32 %v1663
        %vm1939 = vweird.f32 %v1933
        %vm1940 = vmor %vm1938, %vm1939
        %v1941 = vsel %vm1940, %v1933, %v1937
        %v1942 = vand.u32 2147483647, %v1663
        %vm1943 = vcmp.eq.f32.partialorder %v1942, 8.507059e+37
        %v1944 = vand.u32 %v1663, 2147483648
        %v1945 = vor.u32 1.1754944e-38, %v1944
        %v1946 = vsel %vm1943, %v1945, %v1941
        %v1947 = vrcp.pop %v1666
        %v1948 = vmul.f32 %v1666, %v1947
        %v1949 = vsub.f32 1.0, %v1948
        %v1950 = vmul.f32 %v1947, %v1949
        %v1951 = vadd.f32 %v1947, %v1950
        %vm1952 = vweird.f32 %v1666
        %vm1953 = vweird.f32 %v1947
        %vm1954 = vmor %vm1952, %vm1953
        %v1955 = vsel %vm1954, %v1947, %v1951
        %v1956 = vand.u32 2147483647, %v1666
        %vm1957 = vcmp.eq.f32.partialorder %v1956, 8.507059e+37
        %v1958 = vand.u32 %v1666, 2147483648
        %v1959 = vor.u32 1.1754944e-38, %v1958
        %v1960 = vsel %vm1957, %v1959, %v1955
        %v1961 = vrcp.pop %v1669
        %v1962 = vmul.f32 %v1669, %v1961
        %v1963 = vsub.f32 1.0, %v1962
        %v1964 = vmul.f32 %v1961, %v1963
        %v1965 = vadd.f32 %v1961, %v1964
        %vm1966 = vweird.f32 %v1669
        %vm1967 = vweird.f32 %v1961
        %vm1968 = vmor %vm1966, %vm1967
        %v1969 = vsel %vm1968, %v1961, %v1965
        %v1970 = vand.u32 2147483647, %v1669
        %vm1971 = vcmp.eq.f32.partialorder %v1970, 8.507059e+37
        %v1972 = vand.u32 %v1669, 2147483648
        %v1973 = vor.u32 1.1754944e-38, %v1972
        %v1974 = vsel %vm1971, %v1973, %v1969
        %v1975 = vrcp.pop %v1672
        %v1976 = vmul.f32 %v1672, %v1975
        %v1977 = vsub.f32 1.0, %v1976
        %v1978 = vmul.f32 %v1975, %v1977
        %v1979 = vadd.f32 %v1975, %v1978
        %vm1980 = vweird.f32 %v1672
        %vm1981 = vweird.f32 %v1975
        %vm1982 = vmor %vm1980, %vm1981
        %v1983 = vsel %vm1982, %v1975, %v1979
        %v1984 = vand.u32 2147483647, %v1672
        %vm1985 = vcmp.eq.f32.partialorder %v1984, 8.507059e+37
        %v1986 = vand.u32 %v1672, 2147483648
        %v1987 = vor.u32 1.1754944e-38, %v1986
        %v1988 = vsel %vm1985, %v1987, %v1983
        %v1989 = vrcp.pop %v1675
        %v1990 = vmul.f32 %v1675, %v1989
        %v1991 = vsub.f32 1.0, %v1990
        %v1992 = vmul.f32 %v1989, %v1991
        %v1993 = vadd.f32 %v1989, %v1992
        %vm1994 = vweird.f32 %v1675
        %vm1995 = vweird.f32 %v1989
        %vm1996 = vmor %vm1994, %vm1995
        %v1997 = vsel %vm1996, %v1989, %v1993
        %v1998 = vand.u32 2147483647, %v1675
        %vm1999 = vcmp.eq.f32.partialorder %v1998, 8.507059e+37
        %v2000 = vand.u32 %v1675, 2147483648
        %v2001 = vor.u32 1.1754944e-38, %v2000
        %v2002 = vsel %vm1999, %v2001, %v1997
        %v2003 = vrcp.pop %v1678
        %v2004 = vmul.f32 %v1678, %v2003
        %v2005 = vsub.f32 1.0, %v2004
        %v2006 = vmul.f32 %v2003, %v2005
        %v2007 = vadd.f32 %v2003, %v2006
        %vm2008 = vweird.f32 %v1678
        %vm2009 = vweird.f32 %v2003
        %vm2010 = vmor %vm2008, %vm2009
        %v2011 = vsel %vm2010, %v2003, %v2007
        %v2012 = vand.u32 2147483647, %v1678
        %vm2013 = vcmp.eq.f32.partialorder %v2012, 8.507059e+37
        %v2014 = vand.u32 %v1678, 2147483648
        %v2015 = vor.u32 1.1754944e-38, %v2014
        %v2016 = vsel %vm2013, %v2015, %v2011
        %v2017 = vrcp.pop %v1681
        %v2018 = vmul.f32 %v1681, %v2017
        %v2019 = vsub.f32 1.0, %v2018
        %v2020 = vmul.f32 %v2017, %v2019
        %v2021 = vadd.f32 %v2017, %v2020
        %vm2022 = vweird.f32 %v1681
        %vm2023 = vweird.f32 %v2017
        %vm2024 = vmor %vm2022, %vm2023
        %v2025 = vsel %vm2024, %v2017, %v2021
        %v2026 = vand.u32 2147483647, %v1681
        %vm2027 = vcmp.eq.f32.partialorder %v2026, 8.507059e+37
        %v2028 = vand.u32 %v1681, 2147483648
        %v2029 = vor.u32 1.1754944e-38, %v2028
        %v2030 = vsel %vm2027, %v2029, %v2025
        %v2031 = vrcp.pop %v1684
        %v2032 = vmul.f32 %v1684, %v2031
        %v2033 = vsub.f32 1.0, %v2032
        %v2034 = vmul.f32 %v2031, %v2033
        %v2035 = vadd.f32 %v2031, %v2034
        %vm2036 = vweird.f32 %v1684
        %vm2037 = vweird.f32 %v2031
        %vm2038 = vmor %vm2036, %vm2037
        %v2039 = vsel %vm2038, %v2031, %v2035
        %v2040 = vand.u32 2147483647, %v1684
        %vm2041 = vcmp.eq.f32.partialorder %v2040, 8.507059e+37
        %v2042 = vand.u32 %v1684, 2147483648
        %v2043 = vor.u32 1.1754944e-38, %v2042
        %v2044 = vsel %vm2041, %v2043, %v2039
        %v2045 = vrcp.pop %v1687
        %v2046 = vmul.f32 %v1687, %v2045
        %v2047 = vsub.f32 1.0, %v2046
        %v2048 = vmul.f32 %v2045, %v2047
        %v2049 = vadd.f32 %v2045, %v2048
        %vm2050 = vweird.f32 %v1687
        %vm2051 = vweird.f32 %v2045
        %vm2052 = vmor %vm2050, %vm2051
        %v2053 = vsel %vm2052, %v2045, %v2049
        %v2054 = vand.u32 2147483647, %v1687
        %vm2055 = vcmp.eq.f32.partialorder %v2054, 8.507059e+37
        %v2056 = vand.u32 %v1687, 2147483648
        %v2057 = vor.u32 1.1754944e-38, %v2056
        %v2058 = vsel %vm2055, %v2057, %v2053
        %v2059 = vrcp.pop %v1690
        %v2060 = vmul.f32 %v1690, %v2059
        %v2061 = vsub.f32 1.0, %v2060
        %v2062 = vmul.f32 %v2059, %v2061
        %v2063 = vadd.f32 %v2059, %v2062
        %vm2064 = vweird.f32 %v1690
        %vm2065 = vweird.f32 %v2059
        %vm2066 = vmor %vm2064, %vm2065
        %v2067 = vsel %vm2066, %v2059, %v2063
        %v2068 = vand.u32 2147483647, %v1690
        %vm2069 = vcmp.eq.f32.partialorder %v2068, 8.507059e+37
        %v2070 = vand.u32 %v1690, 2147483648
        %v2071 = vor.u32 1.1754944e-38, %v2070
        %v2072 = vsel %vm2069, %v2071, %v2067
        %v2073 = vrcp.pop %v1693
        %v2074 = vmul.f32 %v1693, %v2073
        %v2075 = vsub.f32 1.0, %v2074
        %v2076 = vmul.f32 %v2073, %v2075
        %v2077 = vadd.f32 %v2073, %v2076
        %vm2078 = vweird.f32 %v1693
        %vm2079 = vweird.f32 %v2073
        %vm2080 = vmor %vm2078, %vm2079
        %v2081 = vsel %vm2080, %v2073, %v2077
        %v2082 = vand.u32 2147483647, %v1693
        %vm2083 = vcmp.eq.f32.partialorder %v2082, 8.507059e+37
        %v2084 = vand.u32 %v1693, 2147483648
        %v2085 = vor.u32 1.1754944e-38, %v2084
        %v2086 = vsel %vm2083, %v2085, %v2081
        %v2087 = vrcp.pop %v1696
        %v2088 = vmul.f32 %v1696, %v2087
        %v2089 = vsub.f32 1.0, %v2088
        %v2090 = vmul.f32 %v2087, %v2089
        %v2091 = vadd.f32 %v2087, %v2090
        %vm2092 = vweird.f32 %v1696
        %vm2093 = vweird.f32 %v2087
        %vm2094 = vmor %vm2092, %vm2093
        %v2095 = vsel %vm2094, %v2087, %v2091
        %v2096 = vand.u32 2147483647, %v1696
        %vm2097 = vcmp.eq.f32.partialorder %v2096, 8.507059e+37
        %v2098 = vand.u32 %v1696, 2147483648
        %v2099 = vor.u32 1.1754944e-38, %v2098
        %v2100 = vsel %vm2097, %v2099, %v2095
        %v2101 = vrcp.pop %v1699
        %v2102 = vmul.f32 %v1699, %v2101
        %v2103 = vsub.f32 1.0, %v2102
        %v2104 = vmul.f32 %v2101, %v2103
        %v2105 = vadd.f32 %v2101, %v2104
        %vm2106 = vweird.f32 %v1699
        %vm2107 = vweird.f32 %v2101
        %vm2108 = vmor %vm2106, %vm2107
        %v2109 = vsel %vm2108, %v2101, %v2105
        %v2110 = vand.u32 2147483647, %v1699
        %vm2111 = vcmp.eq.f32.partialorder %v2110, 8.507059e+37
        %v2112 = vand.u32 %v1699, 2147483648
        %v2113 = vor.u32 1.1754944e-38, %v2112
        %v2114 = vsel %vm2111, %v2113, %v2109
        %v2115 = vrcp.pop %v1702
        %v2116 = vmul.f32 %v1702, %v2115
        %v2117 = vsub.f32 1.0, %v2116
        %v2118 = vmul.f32 %v2115, %v2117
        %v2119 = vadd.f32 %v2115, %v2118
        %vm2120 = vweird.f32 %v1702
        %vm2121 = vweird.f32 %v2115
        %vm2122 = vmor %vm2120, %vm2121
        %v2123 = vsel %vm2122, %v2115, %v2119
        %v2124 = vand.u32 2147483647, %v1702
        %vm2125 = vcmp.eq.f32.partialorder %v2124, 8.507059e+37
        %v2126 = vand.u32 %v1702, 2147483648
        %v2127 = vor.u32 1.1754944e-38, %v2126
        %v2128 = vsel %vm2125, %v2127, %v2123
        %v2129 = vrcp.pop %v1705
        %v2130 = vmul.f32 %v1705, %v2129
        %v2131 = vsub.f32 1.0, %v2130
        %v2132 = vmul.f32 %v2129, %v2131
        %v2133 = vadd.f32 %v2129, %v2132
        %vm2134 = vweird.f32 %v1705
        %vm2135 = vweird.f32 %v2129
        %vm2136 = vmor %vm2134, %vm2135
        %v2137 = vsel %vm2136, %v2129, %v2133
        %v2138 = vand.u32 2147483647, %v1705
        %vm2139 = vcmp.eq.f32.partialorder %v2138, 8.507059e+37
        %v2140 = vand.u32 %v1705, 2147483648
        %v2141 = vor.u32 1.1754944e-38, %v2140
        %v2142 = vsel %vm2139, %v2141, %v2137
        %v2143 = vrcp.pop %v1708
        %v2144 = vmul.f32 %v1708, %v2143
        %v2145 = vsub.f32 1.0, %v2144
        %v2146 = vmul.f32 %v2143, %v2145
        %v2147 = vadd.f32 %v2143, %v2146
        %vm2148 = vweird.f32 %v1708
        %vm2149 = vweird.f32 %v2143
        %vm2150 = vmor %vm2148, %vm2149
        %v2151 = vsel %vm2150, %v2143, %v2147
        %v2152 = vand.u32 2147483647, %v1708
        %vm2153 = vcmp.eq.f32.partialorder %v2152, 8.507059e+37
        %v2154 = vand.u32 %v1708, 2147483648
        %v2155 = vor.u32 1.1754944e-38, %v2154
        %v2156 = vsel %vm2153, %v2155, %v2151
        %v2157 = vmul.f32 %v1486, %v1722
        %v2158 = vmul.f32 %v1488, %v1722
        %v2159 = vmul.f32 %v1490, %v1736
        %v2160 = vmul.f32 %v1492, %v1736
        %v2161 = vmul.f32 %v1494, %v1750
        %v2162 = vmul.f32 %v1496, %v1750
        %v2163 = vmul.f32 %v1498, %v1764
        %v2164 = vmul.f32 %v1500, %v1764
        %v2165 = vmul.f32 %v1502, %v1778
        %v2166 = vmul.f32 %v1504, %v1778
        %v2167 = vmul.f32 %v1506, %v1792
        %v2168 = vmul.f32 %v1508, %v1792
        %v2169 = vmul.f32 %v1510, %v1806
        %v2170 = vmul.f32 %v1512, %v1806
        %v2171 = vmul.f32 %v1514, %v1820
        %v2172 = vmul.f32 %v1516, %v1820
        %v2173 = vmul.f32 %v1518, %v1834
        %v2174 = vmul.f32 %v1520, %v1834
        %v2175 = vmul.f32 %v1522, %v1848
        %v2176 = vmul.f32 %v1524, %v1848
        %v2177 = vmul.f32 %v1526, %v1862
        %v2178 = vmul.f32 %v1528, %v1862
        %v2179 = vmul.f32 %v1530, %v1876
        %v2180 = vmul.f32 %v1532, %v1876
        %v2181 = vmul.f32 %v1534, %v1890
        %v2182 = vmul.f32 %v1536, %v1890
        %v2183 = vmul.f32 %v1538, %v1904
        %v2184 = vmul.f32 %v1540, %v1904
        %v2185 = vmul.f32 %v1542, %v1918
        %v2186 = vmul.f32 %v1544, %v1918
        %v2187 = vmul.f32 %v1546, %v1932
        %v2188 = vmul.f32 %v1548, %v1932
        %v2189 = vmul.f32 %v1550, %v1946
        %v2190 = vmul.f32 %v1552, %v1946
        %v2191 = vmul.f32 %v1554, %v1960
        %v2192 = vmul.f32 %v1556, %v1960
        %v2193 = vmul.f32 %v1558, %v1974
        %v2194 = vmul.f32 %v1560, %v1974
        %v2195 = vmul.f32 %v1562, %v1988
        %v2196 = vmul.f32 %v1564, %v1988
        %v2197 = vmul.f32 %v1566, %v2002
        %v2198 = vmul.f32 %v1568, %v2002
        %v2199 = vmul.f32 %v1570, %v2016
        %v2200 = vmul.f32 %v1572, %v2016
        %v2201 = vmul.f32 %v1574, %v2030
        %v2202 = vmul.f32 %v1576, %v2030
        %v2203 = vmul.f32 %v1578, %v2044
        %v2204 = vmul.f32 %v1580, %v2044
        %v2205 = vmul.f32 %v1582, %v2058
        %v2206 = vmul.f32 %v1584, %v2058
        %v2207 = vmul.f32 %v1586, %v2072
        %v2208 = vmul.f32 %v1588, %v2072
        %v2209 = vmul.f32 %v1590, %v2086
        %v2210 = vmul.f32 %v1592, %v2086
        %v2211 = vmul.f32 %v1594, %v2100
        %v2212 = vmul.f32 %v1596, %v2100
        %v2213 = vmul.f32 %v1598, %v2114
        %v2214 = vmul.f32 %v1600, %v2114
        %v2215 = vmul.f32 %v1602, %v2128
        %v2216 = vmul.f32 %v1604, %v2128
        %v2217 = vmul.f32 %v1606, %v2142
        %v2218 = vmul.f32 %v1608, %v2142
        %v2219 = vmul.f32 %v1610, %v2156
        %v2220 = vmul.f32 %v1612, %v2156
        %v2221 = vpack.c.bf16 %v2158, %v2157
        %v2222 = vpack.c.bf16 %v2160, %v2159
        %v2223 = vpack.c.bf16 %v2162, %v2161
        %v2224 = vpack.c.bf16 %v2164, %v2163
        %v2225 = vpack.c.bf16 %v2166, %v2165
        %v2226 = vpack.c.bf16 %v2168, %v2167
        %v2227 = vpack.c.bf16 %v2170, %v2169
        %v2228 = vpack.c.bf16 %v2172, %v2171
        %v2229 = vpack.c.bf16 %v2174, %v2173
        %v2230 = vpack.c.bf16 %v2176, %v2175
        %v2231 = vpack.c.bf16 %v2178, %v2177
        %v2232 = vpack.c.bf16 %v2180, %v2179
        %v2233 = vpack.c.bf16 %v2182, %v2181
        %v2234 = vpack.c.bf16 %v2184, %v2183
        %v2235 = vpack.c.bf16 %v2186, %v2185
        %v2236 = vpack.c.bf16 %v2188, %v2187
        %v2237 = vpack.c.bf16 %v2190, %v2189
        %v2238 = vpack.c.bf16 %v2192, %v2191
        %v2239 = vpack.c.bf16 %v2194, %v2193
        %v2240 = vpack.c.bf16 %v2196, %v2195
        %v2241 = vpack.c.bf16 %v2198, %v2197
        %v2242 = vpack.c.bf16 %v2200, %v2199
        %v2243 = vpack.c.bf16 %v2202, %v2201
        %v2244 = vpack.c.bf16 %v2204, %v2203
        %v2245 = vpack.c.bf16 %v2206, %v2205
        %v2246 = vpack.c.bf16 %v2208, %v2207
        %v2247 = vpack.c.bf16 %v2210, %v2209
        %v2248 = vpack.c.bf16 %v2212, %v2211
        %v2249 = vpack.c.bf16 %v2214, %v2213
        %v2250 = vpack.c.bf16 %v2216, %v2215
        %v2251 = vpack.c.bf16 %v2218, %v2217
        %v2252 = vpack.c.bf16 %v2220, %v2219
        %2253 = vst [vmem:[%s407] sm:$0xff] %v2221
        %2254 = vst [vmem:[%s407 + $0x8] sm:$0xff] %v2222
        %2255 = vst [vmem:[%s407 + $0x10] sm:$0xff] %v2223
        %2256 = vst [vmem:[%s407 + $0x18] sm:$0xff] %v2224
        %2257 = vst [vmem:[%s407 + $0x20] sm:$0xff] %v2225
        %2258 = vst [vmem:[%s407 + $0x28] sm:$0xff] %v2226
        %2259 = vst [vmem:[%s407 + $0x30] sm:$0xff] %v2227
        %2260 = vst [vmem:[%s407 + $0x38] sm:$0xff] %v2228
        %2261 = vst [vmem:[%s407 + $0x40] sm:$0xff] %v2229
        %2262 = vst [vmem:[%s407 + $0x48] sm:$0xff] %v2230
        %2263 = vst [vmem:[%s407 + $0x50] sm:$0xff] %v2231
        %2264 = vst [vmem:[%s407 + $0x58] sm:$0xff] %v2232
        %2265 = vst [vmem:[%s407 + $0x60] sm:$0xff] %v2233
        %2266 = vst [vmem:[%s407 + $0x68] sm:$0xff] %v2234
        %2267 = vst [vmem:[%s407 + $0x70] sm:$0xff] %v2235
        %2268 = vst [vmem:[%s407 + $0x78] sm:$0xff] %v2236
        %2269 = vst [vmem:[%s407 + $0x80] sm:$0xff] %v2237
        %2270 = vst [vmem:[%s407 + $0x88] sm:$0xff] %v2238
        %2271 = vst [vmem:[%s407 + $0x90] sm:$0xff] %v2239
        %2272 = vst [vmem:[%s407 + $0x98] sm:$0xff] %v2240
        %2273 = vst [vmem:[%s407 + $0xa0] sm:$0xff] %v2241
        %2274 = vst [vmem:[%s407 + $0xa8] sm:$0xff] %v2242
        %2275 = vst [vmem:[%s407 + $0xb0] sm:$0xff] %v2243
        %2276 = vst [vmem:[%s407 + $0xb8] sm:$0xff] %v2244
        %2277 = vst [vmem:[%s407 + $0xc0] sm:$0xff] %v2245
        %2278 = vst [vmem:[%s407 + $0xc8] sm:$0xff] %v2246
        %2279 = vst [vmem:[%s407 + $0xd0] sm:$0xff] %v2247
        %2280 = vst [vmem:[%s407 + $0xd8] sm:$0xff] %v2248
        %2281 = vst [vmem:[%s407 + $0xe0] sm:$0xff] %v2249
        %2282 = vst [vmem:[%s407 + $0xe8] sm:$0xff] %v2250
        %2283 = vst [vmem:[%s407 + $0xf0] sm:$0xff] %v2251
        %2284 = vst [vmem:[%s407 + $0xf8] sm:$0xff] %v2252
        %v2285 = vld [vmem:[%s407] sm:$0xff]
        %v2286 = vld [vmem:[%s407 + $0x8] sm:$0xff]
        %v2287 = vld [vmem:[%s407 + $0x10] sm:$0xff]
        %v2288 = vld [vmem:[%s407 + $0x18] sm:$0xff]
        %v2289 = vld [vmem:[%s407 + $0x20] sm:$0xff]
        %v2290 = vld [vmem:[%s407 + $0x28] sm:$0xff]
        %v2291 = vld [vmem:[%s407 + $0x30] sm:$0xff]
        %v2292 = vld [vmem:[%s407 + $0x38] sm:$0xff]
        %v2293 = vld [vmem:[%s407 + $0x40] sm:$0xff]
        %v2294 = vld [vmem:[%s407 + $0x48] sm:$0xff]
        %v2295 = vld [vmem:[%s407 + $0x50] sm:$0xff]
        %v2296 = vld [vmem:[%s407 + $0x58] sm:$0xff]
        %v2297 = vld [vmem:[%s407 + $0x60] sm:$0xff]
        %v2298 = vld [vmem:[%s407 + $0x68] sm:$0xff]
        %v2299 = vld [vmem:[%s407 + $0x70] sm:$0xff]
        %v2300 = vld [vmem:[%s407 + $0x78] sm:$0xff]
        %v2301 = vld [vmem:[%s407 + $0x80] sm:$0xff]
        %v2302 = vld [vmem:[%s407 + $0x88] sm:$0xff]
        %v2303 = vld [vmem:[%s407 + $0x90] sm:$0xff]
        %v2304 = vld [vmem:[%s407 + $0x98] sm:$0xff]
        %v2305 = vld [vmem:[%s407 + $0xa0] sm:$0xff]
        %v2306 = vld [vmem:[%s407 + $0xa8] sm:$0xff]
        %v2307 = vld [vmem:[%s407 + $0xb0] sm:$0xff]
        %v2308 = vld [vmem:[%s407 + $0xb8] sm:$0xff]
        %v2309 = vld [vmem:[%s407 + $0xc0] sm:$0xff]
        %v2310 = vld [vmem:[%s407 + $0xc8] sm:$0xff]
        %v2311 = vld [vmem:[%s407 + $0xd0] sm:$0xff]
        %v2312 = vld [vmem:[%s407 + $0xd8] sm:$0xff]
        %v2313 = vld [vmem:[%s407 + $0xe0] sm:$0xff]
        %v2314 = vld [vmem:[%s407 + $0xe8] sm:$0xff]
        %v2315 = vld [vmem:[%s407 + $0xf0] sm:$0xff]
        %v2316 = vld [vmem:[%s407 + $0xf8] sm:$0xff]
        %v2317 = vld [vmem:[#allocation3] sm:$0xf]
        %v2318 = vld [vmem:[#allocation3 + $0x4] sm:$0xf]
        %v2319 = vld [vmem:[#allocation3 + $0x8] sm:$0xf]
        %v2320 = vld [vmem:[#allocation3 + $0xc] sm:$0xf]
        %v2321 = vld [vmem:[#allocation3 + $0x10] sm:$0xf]
        %v2322 = vld [vmem:[#allocation3 + $0x14] sm:$0xf]
        %v2323 = vld [vmem:[#allocation3 + $0x18] sm:$0xf]
        %v2324 = vld [vmem:[#allocation3 + $0x1c] sm:$0xf]
        %v2325 = vld [vmem:[#allocation3 + $0x20] sm:$0xf]
        %v2326 = vld [vmem:[#allocation3 + $0x24] sm:$0xf]
        %v2327 = vld [vmem:[#allocation3 + $0x28] sm:$0xf]
        %v2328 = vld [vmem:[#allocation3 + $0x2c] sm:$0xf]
        %v2329 = vld [vmem:[#allocation3 + $0x30] sm:$0xf]
        %v2330 = vld [vmem:[#allocation3 + $0x34] sm:$0xf]
        %v2331 = vld [vmem:[#allocation3 + $0x38] sm:$0xf]
        %v2332 = vld [vmem:[#allocation3 + $0x3c] sm:$0xf]
        %v2333 = vld [vmem:[#allocation3 + $0x40] sm:$0xf]
        %v2334 = vld [vmem:[#allocation3 + $0x44] sm:$0xf]
        %v2335 = vld [vmem:[#allocation3 + $0x48] sm:$0xf]
        %v2336 = vld [vmem:[#allocation3 + $0x4c] sm:$0xf]
        %v2337 = vld [vmem:[#allocation3 + $0x50] sm:$0xf]
        %v2338 = vld [vmem:[#allocation3 + $0x54] sm:$0xf]
        %v2339 = vld [vmem:[#allocation3 + $0x58] sm:$0xf]
        %v2340 = vld [vmem:[#allocation3 + $0x5c] sm:$0xf]
        %v2341 = vld [vmem:[#allocation3 + $0x60] sm:$0xf]
        %v2342 = vld [vmem:[#allocation3 + $0x64] sm:$0xf]
        %v2343 = vld [vmem:[#allocation3 + $0x68] sm:$0xf]
        %v2344 = vld [vmem:[#allocation3 + $0x6c] sm:$0xf]
        %v2345 = vld [vmem:[#allocation3 + $0x70] sm:$0xf]
        %v2346 = vld [vmem:[#allocation3 + $0x74] sm:$0xf]
        %v2347 = vld [vmem:[#allocation3 + $0x78] sm:$0xf]
        %v2348 = vld [vmem:[#allocation3 + $0x7c] sm:$0xf]
        %v2381 = vunpack.c.l.b16 %v2285
        %v2382 = vunpack.c.h.b16 %v2285
        %v2383 = vunpack.c.l.b16 %v2286
        %v2384 = vunpack.c.h.b16 %v2286
        %v2385 = vunpack.c.l.b16 %v2287
        %v2386 = vunpack.c.h.b16 %v2287
        %v2387 = vunpack.c.l.b16 %v2288
        %v2388 = vunpack.c.h.b16 %v2288
        %v2389 = vunpack.c.l.b16 %v2289
        %v2390 = vunpack.c.h.b16 %v2289
        %v2391 = vunpack.c.l.b16 %v2290
        %v2392 = vunpack.c.h.b16 %v2290
        %v2393 = vunpack.c.l.b16 %v2291
        %v2394 = vunpack.c.h.b16 %v2291
        %v2395 = vunpack.c.l.b16 %v2292
        %v2396 = vunpack.c.h.b16 %v2292
        %v2397 = vunpack.c.l.b16 %v2293
        %v2398 = vunpack.c.h.b16 %v2293
        %v2399 = vunpack.c.l.b16 %v2294
        %v2400 = vunpack.c.h.b16 %v2294
        %v2401 = vunpack.c.l.b16 %v2295
        %v2402 = vunpack.c.h.b16 %v2295
        %v2403 = vunpack.c.l.b16 %v2296
        %v2404 = vunpack.c.h.b16 %v2296
        %v2405 = vunpack.c.l.b16 %v2297
        %v2406 = vunpack.c.h.b16 %v2297
        %v2407 = vunpack.c.l.b16 %v2298
        %v2408 = vunpack.c.h.b16 %v2298
        %v2409 = vunpack.c.l.b16 %v2299
        %v2410 = vunpack.c.h.b16 %v2299
        %v2411 = vunpack.c.l.b16 %v2300
        %v2412 = vunpack.c.h.b16 %v2300
        %v2413 = vunpack.c.l.b16 %v2301
        %v2414 = vunpack.c.h.b16 %v2301
        %v2415 = vunpack.c.l.b16 %v2302
        %v2416 = vunpack.c.h.b16 %v2302
        %v2417 = vunpack.c.l.b16 %v2303
        %v2418 = vunpack.c.h.b16 %v2303
        %v2419 = vunpack.c.l.b16 %v2304
        %v2420 = vunpack.c.h.b16 %v2304
        %v2421 = vunpack.c.l.b16 %v2305
        %v2422 = vunpack.c.h.b16 %v2305
        %v2423 = vunpack.c.l.b16 %v2306
        %v2424 = vunpack.c.h.b16 %v2306
        %v2425 = vunpack.c.l.b16 %v2307
        %v2426 = vunpack.c.h.b16 %v2307
        %v2427 = vunpack.c.l.b16 %v2308
        %v2428 = vunpack.c.h.b16 %v2308
        %v2429 = vunpack.c.l.b16 %v2309
        %v2430 = vunpack.c.h.b16 %v2309
        %v2431 = vunpack.c.l.b16 %v2310
        %v2432 = vunpack.c.h.b16 %v2310
        %v2433 = vunpack.c.l.b16 %v2311
        %v2434 = vunpack.c.h.b16 %v2311
        %v2435 = vunpack.c.l.b16 %v2312
        %v2436 = vunpack.c.h.b16 %v2312
        %v2437 = vunpack.c.l.b16 %v2313
        %v2438 = vunpack.c.h.b16 %v2313
        %v2439 = vunpack.c.l.b16 %v2314
        %v2440 = vunpack.c.h.b16 %v2314
        %v2441 = vunpack.c.l.b16 %v2315
        %v2442 = vunpack.c.h.b16 %v2315
        %v2443 = vunpack.c.l.b16 %v2316
        %v2444 = vunpack.c.h.b16 %v2316
        %v2445 = vpack.c.b16 %v2383, %v2381
        %v2446 = vpack.c.b16 %v2384, %v2382
        %v2447 = vpack.c.b16 %v2387, %v2385
        %v2448 = vpack.c.b16 %v2388, %v2386
        %v2449 = vpack.c.b16 %v2391, %v2389
        %v2450 = vpack.c.b16 %v2392, %v2390
        %v2451 = vpack.c.b16 %v2395, %v2393
        %v2452 = vpack.c.b16 %v2396, %v2394
        %v2453 = vpack.c.b16 %v2399, %v2397
        %v2454 = vpack.c.b16 %v2400, %v2398
        %v2455 = vpack.c.b16 %v2403, %v2401
        %v2456 = vpack.c.b16 %v2404, %v2402
        %v2457 = vpack.c.b16 %v2407, %v2405
        %v2458 = vpack.c.b16 %v2408, %v2406
        %v2459 = vpack.c.b16 %v2411, %v2409
        %v2460 = vpack.c.b16 %v2412, %v2410
        %v2461 = vpack.c.b16 %v2415, %v2413
        %v2462 = vpack.c.b16 %v2416, %v2414
        %v2463 = vpack.c.b16 %v2419, %v2417
        %v2464 = vpack.c.b16 %v2420, %v2418
        %v2465 = vpack.c.b16 %v2423, %v2421
        %v2466 = vpack.c.b16 %v2424, %v2422
        %v2467 = vpack.c.b16 %v2427, %v2425
        %v2468 = vpack.c.b16 %v2428, %v2426
        %v2469 = vpack.c.b16 %v2431, %v2429
        %v2470 = vpack.c.b16 %v2432, %v2430
        %v2471 = vpack.c.b16 %v2435, %v2433
        %v2472 = vpack.c.b16 %v2436, %v2434
        %v2473 = vpack.c.b16 %v2439, %v2437
        %v2474 = vpack.c.b16 %v2440, %v2438
        %v2475 = vpack.c.b16 %v2443, %v2441
        %v2476 = vpack.c.b16 %v2444, %v2442
        %v2541 = vunpack.c.l.b16 %v2317
        %v2542 = vunpack.c.l.b16 %v2318
        %v2543 = vunpack.c.l.b16 %v2319
        %v2544 = vunpack.c.l.b16 %v2320
        %v2545 = vunpack.c.l.b16 %v2321
        %v2546 = vunpack.c.l.b16 %v2322
        %v2547 = vunpack.c.l.b16 %v2323
        %v2548 = vunpack.c.l.b16 %v2324
        %v2549 = vunpack.c.l.b16 %v2325
        %v2550 = vunpack.c.l.b16 %v2326
        %v2551 = vunpack.c.l.b16 %v2327
        %v2552 = vunpack.c.l.b16 %v2328
        %v2553 = vunpack.c.l.b16 %v2329
        %v2554 = vunpack.c.l.b16 %v2330
        %v2555 = vunpack.c.l.b16 %v2331
        %v2556 = vunpack.c.l.b16 %v2332
        %v2557 = vunpack.c.l.b16 %v2333
        %v2558 = vunpack.c.l.b16 %v2334
        %v2559 = vunpack.c.l.b16 %v2335
        %v2560 = vunpack.c.l.b16 %v2336
        %v2561 = vunpack.c.l.b16 %v2337
        %v2562 = vunpack.c.l.b16 %v2338
        %v2563 = vunpack.c.l.b16 %v2339
        %v2564 = vunpack.c.l.b16 %v2340
        %v2565 = vunpack.c.l.b16 %v2341
        %v2566 = vunpack.c.l.b16 %v2342
        %v2567 = vunpack.c.l.b16 %v2343
        %v2568 = vunpack.c.l.b16 %v2344
        %v2569 = vunpack.c.l.b16 %v2345
        %v2570 = vunpack.c.l.b16 %v2346
        %v2571 = vunpack.c.l.b16 %v2347
        %v2572 = vunpack.c.l.b16 %v2348
        %v2573 = vpack.c.b16 %v2542, %v2541
        %v2574 = vpack.c.b16 %v2544, %v2543
        %v2575 = vpack.c.b16 %v2546, %v2545
        %v2576 = vpack.c.b16 %v2548, %v2547
        %v2577 = vpack.c.b16 %v2550, %v2549
        %v2578 = vpack.c.b16 %v2552, %v2551
        %v2579 = vpack.c.b16 %v2554, %v2553
        %v2580 = vpack.c.b16 %v2556, %v2555
        %v2581 = vpack.c.b16 %v2558, %v2557
        %v2582 = vpack.c.b16 %v2560, %v2559
        %v2583 = vpack.c.b16 %v2562, %v2561
        %v2584 = vpack.c.b16 %v2564, %v2563
        %v2585 = vpack.c.b16 %v2566, %v2565
        %v2586 = vpack.c.b16 %v2568, %v2567
        %v2587 = vpack.c.b16 %v2570, %v2569
        %v2588 = vpack.c.b16 %v2572, %v2571
        %2605 = vmatpush.bf16.msra.mxu0 %v2580
        %2606 = vmatpush.bf16.msra.mxu0 %v2579
        %2607 = vmatpush.bf16.msra.mxu0 %v2578
        %2608 = vmatpush.bf16.msra.mxu0 %v2577
        %2609 = vmatpush.bf16.msra.mxu0 %v2576
        %2610 = vmatpush.bf16.msra.mxu0 %v2575
        %2611 = vmatpush.bf16.msra.mxu0 %v2574
        %2612 = vmatpush.bf16.msra.mxu0 %v2573
        %2613 = vmatmul.bf16.gmra.mxu0 %v2445
        %v2614 = vpop.f32.mrf.mxu0
        %v2615 = vadd.f32 0.0, %v2614
        %v2616 = vpop.f32.mrf.mxu0
        %v2617 = vadd.f32 0.0, %v2616
        %2618 = vmatmul.bf16.gmra.mxu0 %v2447
        %v2619 = vpop.f32.mrf.mxu0
        %v2620 = vadd.f32 0.0, %v2619
        %v2621 = vpop.f32.mrf.mxu0
        %v2622 = vadd.f32 0.0, %v2621
        %2623 = vmatmul.bf16.gmra.mxu0 %v2449
        %v2624 = vpop.f32.mrf.mxu0
        %v2625 = vadd.f32 0.0, %v2624
        %v2626 = vpop.f32.mrf.mxu0
        %v2627 = vadd.f32 0.0, %v2626
        %2628 = vmatmul.bf16.gmra.mxu0 %v2451
        %v2629 = vpop.f32.mrf.mxu0
        %v2630 = vadd.f32 0.0, %v2629
        %v2631 = vpop.f32.mrf.mxu0
        %v2632 = vadd.f32 0.0, %v2631
        %2633 = vmatmul.bf16.gmra.mxu0 %v2453
        %v2634 = vpop.f32.mrf.mxu0
        %v2635 = vadd.f32 0.0, %v2634
        %v2636 = vpop.f32.mrf.mxu0
        %v2637 = vadd.f32 0.0, %v2636
        %2638 = vmatmul.bf16.gmra.mxu0 %v2455
        %v2639 = vpop.f32.mrf.mxu0
        %v2640 = vadd.f32 0.0, %v2639
        %v2641 = vpop.f32.mrf.mxu0
        %v2642 = vadd.f32 0.0, %v2641
        %2643 = vmatmul.bf16.gmra.mxu0 %v2457
        %v2644 = vpop.f32.mrf.mxu0
        %v2645 = vadd.f32 0.0, %v2644
        %v2646 = vpop.f32.mrf.mxu0
        %v2647 = vadd.f32 0.0, %v2646
        %2648 = vmatmul.bf16.gmra.mxu0 %v2459
        %v2649 = vpop.f32.mrf.mxu0
        %v2650 = vadd.f32 0.0, %v2649
        %v2651 = vpop.f32.mrf.mxu0
        %v2652 = vadd.f32 0.0, %v2651
        %2653 = vmatmul.bf16.gmra.mxu0 %v2461
        %v2654 = vpop.f32.mrf.mxu0
        %v2655 = vadd.f32 0.0, %v2654
        %v2656 = vpop.f32.mrf.mxu0
        %v2657 = vadd.f32 0.0, %v2656
        %2658 = vmatmul.bf16.gmra.mxu0 %v2463
        %v2659 = vpop.f32.mrf.mxu0
        %v2660 = vadd.f32 0.0, %v2659
        %v2661 = vpop.f32.mrf.mxu0
        %v2662 = vadd.f32 0.0, %v2661
        %2663 = vmatmul.bf16.gmra.mxu0 %v2465
        %v2664 = vpop.f32.mrf.mxu0
        %v2665 = vadd.f32 0.0, %v2664
        %v2666 = vpop.f32.mrf.mxu0
        %v2667 = vadd.f32 0.0, %v2666
        %2668 = vmatmul.bf16.gmra.mxu0 %v2467
        %v2669 = vpop.f32.mrf.mxu0
        %v2670 = vadd.f32 0.0, %v2669
        %v2671 = vpop.f32.mrf.mxu0
        %v2672 = vadd.f32 0.0, %v2671
        %2673 = vmatmul.bf16.gmra.mxu0 %v2469
        %v2674 = vpop.f32.mrf.mxu0
        %v2675 = vadd.f32 0.0, %v2674
        %v2676 = vpop.f32.mrf.mxu0
        %v2677 = vadd.f32 0.0, %v2676
        %2678 = vmatmul.bf16.gmra.mxu0 %v2471
        %v2679 = vpop.f32.mrf.mxu0
        %v2680 = vadd.f32 0.0, %v2679
        %v2681 = vpop.f32.mrf.mxu0
        %v2682 = vadd.f32 0.0, %v2681
        %2683 = vmatmul.bf16.gmra.mxu0 %v2473
        %v2684 = vpop.f32.mrf.mxu0
        %v2685 = vadd.f32 0.0, %v2684
        %v2686 = vpop.f32.mrf.mxu0
        %v2687 = vadd.f32 0.0, %v2686
        %2688 = vmatmul.bf16.gmra.mxu0 %v2475
        %v2689 = vpop.f32.mrf.mxu0
        %v2690 = vadd.f32 0.0, %v2689
        %v2691 = vpop.f32.mrf.mxu0
        %v2692 = vadd.f32 0.0, %v2691
        %2693 = vdwg.mxu0
        %2694 = vmatpush.bf16.msra.mxu0 %v2588
        %2695 = vmatpush.bf16.msra.mxu0 %v2587
        %2696 = vmatpush.bf16.msra.mxu0 %v2586
        %2697 = vmatpush.bf16.msra.mxu0 %v2585
        %2698 = vmatpush.bf16.msra.mxu0 %v2584
        %2699 = vmatpush.bf16.msra.mxu0 %v2583
        %2700 = vmatpush.bf16.msra.mxu0 %v2582
        %2701 = vmatpush.bf16.msra.mxu0 %v2581
        %2702 = vmatmul.bf16.gmra.mxu0 %v2446
        %v2703 = vpop.f32.mrf.mxu0
        %v2704 = vadd.f32 %v2615, %v2703
        %v2705 = vpop.f32.mrf.mxu0
        %v2706 = vadd.f32 %v2617, %v2705
        %2707 = vmatmul.bf16.gmra.mxu0 %v2448
        %v2708 = vpop.f32.mrf.mxu0
        %v2709 = vadd.f32 %v2620, %v2708
        %v2710 = vpop.f32.mrf.mxu0
        %v2711 = vadd.f32 %v2622, %v2710
        %2712 = vmatmul.bf16.gmra.mxu0 %v2450
        %v2713 = vpop.f32.mrf.mxu0
        %v2714 = vadd.f32 %v2625, %v2713
        %v2715 = vpop.f32.mrf.mxu0
        %v2716 = vadd.f32 %v2627, %v2715
        %2717 = vmatmul.bf16.gmra.mxu0 %v2452
        %v2718 = vpop.f32.mrf.mxu0
        %v2719 = vadd.f32 %v2630, %v2718
        %v2720 = vpop.f32.mrf.mxu0
        %v2721 = vadd.f32 %v2632, %v2720
        %2722 = vmatmul.bf16.gmra.mxu0 %v2454
        %v2723 = vpop.f32.mrf.mxu0
        %v2724 = vadd.f32 %v2635, %v2723
        %v2725 = vpop.f32.mrf.mxu0
        %v2726 = vadd.f32 %v2637, %v2725
        %2727 = vmatmul.bf16.gmra.mxu0 %v2456
        %v2728 = vpop.f32.mrf.mxu0
        %v2729 = vadd.f32 %v2640, %v2728
        %v2730 = vpop.f32.mrf.mxu0
        %v2731 = vadd.f32 %v2642, %v2730
        %2732 = vmatmul.bf16.gmra.mxu0 %v2458
        %v2733 = vpop.f32.mrf.mxu0
        %v2734 = vadd.f32 %v2645, %v2733
        %v2735 = vpop.f32.mrf.mxu0
        %v2736 = vadd.f32 %v2647, %v2735
        %2737 = vmatmul.bf16.gmra.mxu0 %v2460
        %v2738 = vpop.f32.mrf.mxu0
        %v2739 = vadd.f32 %v2650, %v2738
        %v2740 = vpop.f32.mrf.mxu0
        %v2741 = vadd.f32 %v2652, %v2740
        %2742 = vmatmul.bf16.gmra.mxu0 %v2462
        %v2743 = vpop.f32.mrf.mxu0
        %v2744 = vadd.f32 %v2655, %v2743
        %v2745 = vpop.f32.mrf.mxu0
        %v2746 = vadd.f32 %v2657, %v2745
        %2747 = vmatmul.bf16.gmra.mxu0 %v2464
        %v2748 = vpop.f32.mrf.mxu0
        %v2749 = vadd.f32 %v2660, %v2748
        %v2750 = vpop.f32.mrf.mxu0
        %v2751 = vadd.f32 %v2662, %v2750
        %2752 = vmatmul.bf16.gmra.mxu0 %v2466
        %v2753 = vpop.f32.mrf.mxu0
        %v2754 = vadd.f32 %v2665, %v2753
        %v2755 = vpop.f32.mrf.mxu0
        %v2756 = vadd.f32 %v2667, %v2755
        %2757 = vmatmul.bf16.gmra.mxu0 %v2468
        %v2758 = vpop.f32.mrf.mxu0
        %v2759 = vadd.f32 %v2670, %v2758
        %v2760 = vpop.f32.mrf.mxu0
        %v2761 = vadd.f32 %v2672, %v2760
        %2762 = vmatmul.bf16.gmra.mxu0 %v2470
        %v2763 = vpop.f32.mrf.mxu0
        %v2764 = vadd.f32 %v2675, %v2763
        %v2765 = vpop.f32.mrf.mxu0
        %v2766 = vadd.f32 %v2677, %v2765
        %2767 = vmatmul.bf16.gmra.mxu0 %v2472
        %v2768 = vpop.f32.mrf.mxu0
        %v2769 = vadd.f32 %v2680, %v2768
        %v2770 = vpop.f32.mrf.mxu0
        %v2771 = vadd.f32 %v2682, %v2770
        %2772 = vmatmul.bf16.gmra.mxu0 %v2474
        %v2773 = vpop.f32.mrf.mxu0
        %v2774 = vadd.f32 %v2685, %v2773
        %v2775 = vpop.f32.mrf.mxu0
        %v2776 = vadd.f32 %v2687, %v2775
        %2777 = vmatmul.bf16.gmra.mxu0 %v2476
        %v2778 = vpop.f32.mrf.mxu0
        %v2779 = vadd.f32 %v2690, %v2778
        %v2780 = vpop.f32.mrf.mxu0
        %v2781 = vadd.f32 %v2692, %v2780
        %2782 = vdwg.mxu0
        %s2783 = sld [smem:[#allocation4]]
        %v2784 = vstv %s2783
        %v2785 = vmul.f32 %v2784, %v2704
        %v2786 = vmul.f32 %v2784, %v2706
        %v2787 = vmul.f32 %v2784, %v2709
        %v2788 = vmul.f32 %v2784, %v2711
        %v2789 = vmul.f32 %v2784, %v2714
        %v2790 = vmul.f32 %v2784, %v2716
        %v2791 = vmul.f32 %v2784, %v2719
        %v2792 = vmul.f32 %v2784, %v2721
        %v2793 = vmul.f32 %v2784, %v2724
        %v2794 = vmul.f32 %v2784, %v2726
        %v2795 = vmul.f32 %v2784, %v2729
        %v2796 = vmul.f32 %v2784, %v2731
        %v2797 = vmul.f32 %v2784, %v2734
        %v2798 = vmul.f32 %v2784, %v2736
        %v2799 = vmul.f32 %v2784, %v2739
        %v2800 = vmul.f32 %v2784, %v2741
        %v2801 = vmul.f32 %v2784, %v2744
        %v2802 = vmul.f32 %v2784, %v2746
        %v2803 = vmul.f32 %v2784, %v2749
        %v2804 = vmul.f32 %v2784, %v2751
        %v2805 = vmul.f32 %v2784, %v2754
        %v2806 = vmul.f32 %v2784, %v2756
        %v2807 = vmul.f32 %v2784, %v2759
        %v2808 = vmul.f32 %v2784, %v2761
        %v2809 = vmul.f32 %v2784, %v2764
        %v2810 = vmul.f32 %v2784, %v2766
        %v2811 = vmul.f32 %v2784, %v2769
        %v2812 = vmul.f32 %v2784, %v2771
        %v2813 = vmul.f32 %v2784, %v2774
        %v2814 = vmul.f32 %v2784, %v2776
        %v2815 = vmul.f32 %v2784, %v2779
        %v2816 = vmul.f32 %v2784, %v2781
        %v2817 = vld [vmem:[%s421] sm:$0xff]
        %v2818 = vld [vmem:[%s421 + $0x8] sm:$0xff]
        %v2819 = vld [vmem:[%s421 + $0x10] sm:$0xff]
        %v2820 = vld [vmem:[%s421 + $0x18] sm:$0xff]
        %v2821 = vld [vmem:[%s421 + $0x20] sm:$0xff]
        %v2822 = vld [vmem:[%s421 + $0x28] sm:$0xff]
        %v2823 = vld [vmem:[%s421 + $0x30] sm:$0xff]
        %v2824 = vld [vmem:[%s421 + $0x38] sm:$0xff]
        %v2825 = vld [vmem:[%s421 + $0x40] sm:$0xff]
        %v2826 = vld [vmem:[%s421 + $0x48] sm:$0xff]
        %v2827 = vld [vmem:[%s421 + $0x50] sm:$0xff]
        %v2828 = vld [vmem:[%s421 + $0x58] sm:$0xff]
        %v2829 = vld [vmem:[%s421 + $0x60] sm:$0xff]
        %v2830 = vld [vmem:[%s421 + $0x68] sm:$0xff]
        %v2831 = vld [vmem:[%s421 + $0x70] sm:$0xff]
        %v2832 = vld [vmem:[%s421 + $0x78] sm:$0xff]
        %v2833 = vld [vmem:[%s421 + $0x80] sm:$0xff]
        %v2834 = vld [vmem:[%s421 + $0x88] sm:$0xff]
        %v2835 = vld [vmem:[%s421 + $0x90] sm:$0xff]
        %v2836 = vld [vmem:[%s421 + $0x98] sm:$0xff]
        %v2837 = vld [vmem:[%s421 + $0xa0] sm:$0xff]
        %v2838 = vld [vmem:[%s421 + $0xa8] sm:$0xff]
        %v2839 = vld [vmem:[%s421 + $0xb0] sm:$0xff]
        %v2840 = vld [vmem:[%s421 + $0xb8] sm:$0xff]
        %v2841 = vld [vmem:[%s421 + $0xc0] sm:$0xff]
        %v2842 = vld [vmem:[%s421 + $0xc8] sm:$0xff]
        %v2843 = vld [vmem:[%s421 + $0xd0] sm:$0xff]
        %v2844 = vld [vmem:[%s421 + $0xd8] sm:$0xff]
        %v2845 = vld [vmem:[%s421 + $0xe0] sm:$0xff]
        %v2846 = vld [vmem:[%s421 + $0xe8] sm:$0xff]
        %v2847 = vld [vmem:[%s421 + $0xf0] sm:$0xff]
        %v2848 = vld [vmem:[%s421 + $0xf8] sm:$0xff]
        %v2849 = vadd.f32 %v2785, %v2817
        %v2850 = vadd.f32 %v2786, %v2818
        %v2851 = vadd.f32 %v2787, %v2819
        %v2852 = vadd.f32 %v2788, %v2820
        %v2853 = vadd.f32 %v2789, %v2821
        %v2854 = vadd.f32 %v2790, %v2822
        %v2855 = vadd.f32 %v2791, %v2823
        %v2856 = vadd.f32 %v2792, %v2824
        %v2857 = vadd.f32 %v2793, %v2825
        %v2858 = vadd.f32 %v2794, %v2826
        %v2859 = vadd.f32 %v2795, %v2827
        %v2860 = vadd.f32 %v2796, %v2828
        %v2861 = vadd.f32 %v2797, %v2829
        %v2862 = vadd.f32 %v2798, %v2830
        %v2863 = vadd.f32 %v2799, %v2831
        %v2864 = vadd.f32 %v2800, %v2832
        %v2865 = vadd.f32 %v2801, %v2833
        %v2866 = vadd.f32 %v2802, %v2834
        %v2867 = vadd.f32 %v2803, %v2835
        %v2868 = vadd.f32 %v2804, %v2836
        %v2869 = vadd.f32 %v2805, %v2837
        %v2870 = vadd.f32 %v2806, %v2838
        %v2871 = vadd.f32 %v2807, %v2839
        %v2872 = vadd.f32 %v2808, %v2840
        %v2873 = vadd.f32 %v2809, %v2841
        %v2874 = vadd.f32 %v2810, %v2842
        %v2875 = vadd.f32 %v2811, %v2843
        %v2876 = vadd.f32 %v2812, %v2844
        %v2877 = vadd.f32 %v2813, %v2845
        %v2878 = vadd.f32 %v2814, %v2846
        %v2879 = vadd.f32 %v2815, %v2847
        %v2880 = vadd.f32 %v2816, %v2848
        %2881 = vst.msk [vmem:[%s431] sm:$0xff] %vm930, %v2849
        %2882 = vst.msk [vmem:[%s431 + $0x8] sm:$0xff] %vm930, %v2850
        %2883 = vst.msk [vmem:[%s431 + $0x10] sm:$0xff] %vm930, %v2851
        %2884 = vst.msk [vmem:[%s431 + $0x18] sm:$0xff] %vm930, %v2852
        %2885 = vst.msk [vmem:[%s431 + $0x20] sm:$0xff] %vm930, %v2853
        %2886 = vst.msk [vmem:[%s431 + $0x28] sm:$0xff] %vm930, %v2854
        %2887 = vst.msk [vmem:[%s431 + $0x30] sm:$0xff] %vm930, %v2855
        %2888 = vst.msk [vmem:[%s431 + $0x38] sm:$0xff] %vm930, %v2856
        %2889 = vst.msk [vmem:[%s431 + $0x40] sm:$0xff] %vm930, %v2857
        %2890 = vst.msk [vmem:[%s431 + $0x48] sm:$0xff] %vm930, %v2858
        %2891 = vst.msk [vmem:[%s431 + $0x50] sm:$0xff] %vm930, %v2859
        %2892 = vst.msk [vmem:[%s431 + $0x58] sm:$0xff] %vm930, %v2860
        %2893 = vst.msk [vmem:[%s431 + $0x60] sm:$0xff] %vm930, %v2861
        %2894 = vst.msk [vmem:[%s431 + $0x68] sm:$0xff] %vm930, %v2862
        %2895 = vst.msk [vmem:[%s431 + $0x70] sm:$0xff] %vm930, %v2863
        %2896 = vst.msk [vmem:[%s431 + $0x78] sm:$0xff] %vm930, %v2864
        %2897 = vst.msk [vmem:[%s431 + $0x80] sm:$0xff] %vm930, %v2865
        %2898 = vst.msk [vmem:[%s431 + $0x88] sm:$0xff] %vm930, %v2866
        %2899 = vst.msk [vmem:[%s431 + $0x90] sm:$0xff] %vm930, %v2867
        %2900 = vst.msk [vmem:[%s431 + $0x98] sm:$0xff] %vm930, %v2868
        %2901 = vst.msk [vmem:[%s431 + $0xa0] sm:$0xff] %vm930, %v2869
        %2902 = vst.msk [vmem:[%s431 + $0xa8] sm:$0xff] %vm930, %v2870
        %2903 = vst.msk [vmem:[%s431 + $0xb0] sm:$0xff] %vm930, %v2871
        %2904 = vst.msk [vmem:[%s431 + $0xb8] sm:$0xff] %vm930, %v2872
        %2905 = vst.msk [vmem:[%s431 + $0xc0] sm:$0xff] %vm930, %v2873
        %2906 = vst.msk [vmem:[%s431 + $0xc8] sm:$0xff] %vm930, %v2874
        %2907 = vst.msk [vmem:[%s431 + $0xd0] sm:$0xff] %vm930, %v2875
        %2908 = vst.msk [vmem:[%s431 + $0xd8] sm:$0xff] %vm930, %v2876
        %2909 = vst.msk [vmem:[%s431 + $0xe0] sm:$0xff] %vm930, %v2877
        %2910 = vst.msk [vmem:[%s431 + $0xe8] sm:$0xff] %vm930, %v2878
        %2911 = vst.msk [vmem:[%s431 + $0xf0] sm:$0xff] %vm930, %v2879
        %2912 = vst.msk [vmem:[%s431 + $0xf8] sm:$0xff] %vm930, %v2880
        %s2913 = smul.u32 32, %s31
        %p2914 = scmp.lt.s32.totalorder %s30, 1
        %s2915 = scalar_select %p2914, %s30, 1
        %p2916 = scmp.lt.s32.totalorder %s2913, 31
        %s2917 = scalar_select %p2916, %s2913, 31
        %s2918 = smul.addr %s2915, 32
        %s2919 = sadd.s32 %s2917, %s2918
        %s2920 = smul.addr %s2919, 8
        %s2921 = scalar_lea.vmem %s9, %s2920
        %s2922 = sand.u32 %s277, 1
        %s2923 = scalar_lea.sflag [#allocation6], %s2922
        %s2924 = sand.u32 %s277, 1
        %s2925 = smul.addr %s2924, 256
        %s2926 = scalar_lea.vmem [#allocation5], %s2925
        // Predicated region
        $region61: #{self_attn.1} parent=55 // pred_check
          %p2927 = pneg %p259
        $region62: #{self_attn.1} parent=55 // pred_check_branch
          %2929 = sbr.rel (%p2927) target = $region64
        $region63: #{self_attn.1} parent=55 // pred_region
          %s2930 = smul.u32 32, %s31
        $region64: #{self_attn.1} parent=55 // pred_fallthru
          _
        // Predicated region
        $region65: #{self_attn.1} parent=55 // pred_check
          %p2931 = pneg %p287
        $region66: #{self_attn.1} parent=55 // pred_check_branch
          %2933 = sbr.rel (%p2931) target = $region68
        $region67: #{self_attn.1} parent=55 // pred_region
          %s2934 = smul.u32 32, %s31
          %2936 = vsyncadd %s2923, 0
          %s2937 = smul.addr %s2934, 2
          %s2938 = smul.addr %s30, 64
          %s2939 = sadd.s32 %s2937, %s2938
          %s2940 = smul.addr %s2939, 4
          %s2941 = scalar_lea.hbm %s10, %s2940
          %s2942 = sshll.u32 %s2926, 4
          %s2943 = int_to_ptr.vmem [resolvable:$true] %s2942
          %s2944 = sshll.u32 %s2941, 4
          %s2945 = int_to_ptr.hbm [resolvable:$true] %s2944
          %2950 = dma.vmem_to_hbm [thread:$0]  %s2943, 4096, %s2945, %s2923, 128, 128, 8
        $region68: #{self_attn.1} parent=55 // pred_fallthru
          _
      $region56: #{self_attn.1} parent=5 // pred_fallthru
        _
      %p2951 = scmp.le.s32.totalorder 2, %s21
      // Predicated region
      $region69: #{self_attn.1} parent=5 // pred_check
        %p2952 = pneg %p2951
      $region70: #{self_attn.1} parent=5 // pred_check_branch
        %2954 = sbr.rel (%p2952) target = $region72
      $region71: #{self_attn.1} parent=5 // pred_region
        %s2955 = ssub.s32 %s21, 2
        // Predicated region
        $region73: #{self_attn.1} parent=71 // pred_check
          %p2956 = pneg %p265
        $region74: #{self_attn.1} parent=71 // pred_check_branch
          %2958 = sbr.rel (%p2956) target = $region76
        $region75: #{self_attn.1} parent=71 // pred_region
          %s2959 = smul.u32 32, %s33
          %p2960 = scmp.lt.s32.totalorder %s32, 1
          %s2961 = scalar_select %p2960, %s32, 1
          %p2962 = scmp.lt.s32.totalorder %s2959, 31
          %s2963 = scalar_select %p2962, %s2959, 31
          %s2964 = smul.addr %s2961, 32
          %s2965 = sadd.s32 %s2963, %s2964
          %s2966 = smul.addr %s2965, 8
          %s2967 = scalar_lea.vmem %s9, %s2966
        $region76: #{self_attn.1} parent=71 // pred_fallthru
          _
        // Predicated region
        $region77: #{self_attn.1} parent=71 // pred_check
          %p2968 = pneg %p293
        $region78: #{self_attn.1} parent=71 // pred_check_branch
          %2970 = sbr.rel (%p2968) target = $region80
        $region79: #{self_attn.1} parent=71 // pred_region
          %s2971 = sand.u32 %s278, 1
          %s2972 = scalar_lea.sflag [#allocation6], %s2971
          %s2973 = sand.u32 %s278, 1
          %s2974 = smul.addr %s2973, 256
          %s2975 = scalar_lea.vmem [#allocation5], %s2974
          %2977 = dma.done %s2972, 4096
        $region80: #{self_attn.1} parent=71 // pred_fallthru
          _
      $region72: #{self_attn.1} parent=5 // pred_fallthru
        _
    $region6: #{self_attn.1} parent=1 // loop_footer
      %s25 = sadd.s32 1, %s21
    $region7: #{self_attn.1} parent=1 // loop_footer_branch
      %20 = sbr.rel target = $region3
    $region8: #{self_attn.1} parent=1 // loop_exit
      _
    %2978 = vsyncpa [#allocation6], 1
    %s2979 = scalar_lea.sflag [#allocation6], 1
    %2980 = vsyncpa %s2979, 1

</llo_original>
